<compile_context>
chip_gen: v7x
topology: tpu7x:2x2x1
jax: 0.10.0
libtpu: 0.0.40
codegen_flags: <defaults>
</compile_context>

<pallas_src>
import numpy as np
import jax
import jax.numpy as jnp
from jax import lax
from jax.experimental import pallas as pl
from jax.experimental.pallas import tpu as pltpu

EPS = 1e-5  # nn.BatchNorm1d default eps


# ----------------------------- in-kernel helpers -----------------------------

def _dot_bf16(a_f32, m_bf16_ref_val):
    # bf16 MXU matmul with f32 accumulation.
    return jnp.dot(a_f32.astype(jnp.bfloat16), m_bf16_ref_val,
                   preferred_element_type=jnp.float32)


def _batchnorm(y, p, gamma_d, beta_d):
    # y: (N, D) f32, flattened (C, L) per sample. Training-mode BatchNorm1d over (N, L)
    # per channel.  p: (D, D) host-built block-diagonal matrix with entries 1/(N*L) that
    # simultaneously reduces over each channel's L lanes AND broadcasts the result back.
    # gamma_d / beta_d: (1, D) per-channel affine params, pre-broadcast along L on the host.
    colsum = jnp.sum(y, axis=0, keepdims=True)                               # (1, D)
    sqsum = jnp.sum(y * y, axis=0, keepdims=True)                            # (1, D)
    mean_d = jnp.dot(colsum, p, preferred_element_type=jnp.float32)          # (1, D)
    sq_d = jnp.dot(sqsum, p, preferred_element_type=jnp.float32)             # (1, D)
    var_d = sq_d - mean_d * mean_d                                           # biased var
    scale_d = gamma_d * lax.rsqrt(var_d + EPS)
    shift_d = beta_d - mean_d * scale_d
    return y * scale_d + shift_d


# ------------------------------ fused kernel ----------------------------------

def make_fused_kernel(plan):
    n_conv = plan['n_conv']
    n_p = plan['n_p']
    out_pad = plan['out_pad']
    blocks = plan['blocks']

    # Ref layout: x, *conv_mats(bf16), *p_mats(f32), gb_pack, w1(bf16), bcls, w2(f32), out
    def kernel(*refs):
        x_ref = refs[0]
        conv = refs[1:1 + n_conv]
        pmats = refs[1 + n_conv:1 + n_conv + n_p]
        gb_ref, w1_ref, bcls_ref, w2_ref, out_ref = refs[1 + n_conv + n_p:]

        h = x_ref[...]                                           # (N, Cin*Lin) f32
        for blk in blocks:
            d = blk['d_out']
            r0, r1, r2, r3 = blk['gb_rows']
            if blk['type'] == 'down':
                # Fused main-conv + shortcut-conv: ONE (N, 2D) matmul + ONE combined BN
                # (both paths' channels normalized independently by the block-diagonal P).
                y = _dot_bf16(h, conv[blk['m_idx'][0]][...])      # (N, 2D)
                y = _batchnorm(y, pmats[blk['p_fused']][...],
                               gb_ref[r0:r0 + 1, :2 * d],
                               gb_ref[r1:r1 + 1, :2 * d])
                t = jnp.maximum(y[:, :d], 0.0)                    # main path (post norm1+ReLU)
                identity = y[:, d:]                               # shortcut path (post BN)
            else:
                t = _batchnorm(_dot_bf16(h, conv[blk['m_idx'][0]][...]),
                               pmats[blk['p_idx']][...],
                               gb_ref[r0:r0 + 1, :d],
                               gb_ref[r1:r1 + 1, :d])
                t = jnp.maximum(t, 0.0)
                identity = h
            t = _batchnorm(_dot_bf16(t, conv[blk['m_idx'][1]][...]),
                           pmats[blk['p_idx']][...],
                           gb_ref[r2:r2 + 1, :d],
                           gb_ref[r3:r3 + 1, :d])
            h = jnp.maximum(t + identity, 0.0)

        # Classifier: Flatten (already flat) -> Linear(bf16 w, f32 acc) -> ReLU -> Linear(f32)
        hh = jnp.maximum(
            jnp.dot(h.astype(jnp.bfloat16), w1_ref[...],
                    preferred_element_type=jnp.float32) + bcls_ref[0:1, :],
            0.0)
        out_ref[...] = (jnp.dot(hh, w2_ref[...], preferred_element_type=jnp.float32)
                        + bcls_ref[1:2, :out_pad])
    return kernel


# --------------------- parameter setup / matrix precompute -------------------

def conv1d_toeplitz(w, l_in, stride, padding):
    # w: (Cout, Cin, K). Returns M (Cin*Lin, Cout*Lout) with flat_out = flat_in @ M
    # (flatten order: channel-major, length-minor, matching torch NCW flatten).
    w = np.asarray(w, np.float32)
    c_out, c_in, k = w.shape
    l_out = (l_in + 2 * padding - k) // stride + 1
    m = np.zeros((c_in * l_in, c_out * l_out), np.float32)
    for co in range(c_out):
        for ci in range(c_in):
            for kk in range(k):
                for lo in range(l_out):
                    li = lo * stride + kk - padding
                    if 0 <= li < l_in:
                        m[ci * l_in + li, co * l_out + lo] = w[co, ci, kk]
    return m, l_out


def bn_fold_matrix(n_channels, l, n_batch):
    # Block-diagonal (D, D) matrix: per-channel mean-reduce over L and broadcast back.
    d = n_channels * l
    p = np.zeros((d, d), np.float32)
    v = 1.0 / float(n_batch * l)
    for c in range(n_channels):
        p[c * l:(c + 1) * l, c * l:(c + 1) * l] = v
    return p


def init_params(key, input_channels, output_size, hp):
    blocks = []
    in_ch = input_channels
    length = hp['window_size']
    for block in range(hp['hidden_blocks']):
        n_pairs = hp['layer_zero_depth'] + block * hp['layer_scaler']
        for pair in range(n_pairs):
            out_ch = in_ch * 2 if pair == 0 else in_ch
            stride = 2 if pair == 0 else 1
            key, k1, k2, k3 = jax.random.split(key, 4)
            p = {
                'type': 'down' if (stride != 1 or in_ch != out_ch) else 'same',
                'in_ch': in_ch, 'out_ch': out_ch, 'stride': stride, 'l_in': length,
                'w1': 0.1 * jax.random.normal(k1, (out_ch, in_ch, 3), jnp.float32),
                'b1': 0.1 * jax.random.normal(jax.random.fold_in(k1, 1), (out_ch,), jnp.float32),
                'w2': 0.1 * jax.random.normal(k2, (out_ch, out_ch, 3), jnp.float32),
                'b2': 0.1 * jax.random.normal(jax.random.fold_in(k2, 1), (out_ch,), jnp.float32),
                'g1': jnp.ones((out_ch,), jnp.float32), 'be1': jnp.zeros((out_ch,), jnp.float32),
                'g2': jnp.ones((out_ch,), jnp.float32), 'be2': jnp.zeros((out_ch,), jnp.float32),
            }
            if p['type'] == 'down':
                p['wsc'] = 0.1 * jax.random.normal(k3, (out_ch, in_ch, 1), jnp.float32)
                p['bsc'] = 0.1 * jax.random.normal(jax.random.fold_in(k3, 1), (out_ch,), jnp.float32)
                p['gsc'] = jnp.ones((out_ch,), jnp.float32)
                p['besc'] = jnp.zeros((out_ch,), jnp.float32)
            length = (length + 2 * 1 - 3) // stride + 1
            p['l_out'] = length
            blocks.append(p)
            in_ch = out_ch
    flat = in_ch * length
    key, kf1, kf2 = jax.random.split(key, 3)
    cls = {
        'w1': 0.05 * jax.random.normal(kf1, (flat, 1000), jnp.float32),
        'b1': 0.05 * jax.random.normal(jax.random.fold_in(kf1, 1), (1000,), jnp.float32),
        'w2': 0.05 * jax.random.normal(kf2, (1000, output_size), jnp.float32),
        'b2': 0.05 * jax.random.normal(jax.random.fold_in(kf2, 1), (output_size,), jnp.float32),
    }
    return blocks, cls


def prepare_network(blocks, cls, n_batch):
    conv_mats = []        # bf16 matmul operands
    p_mats = []           # f32 BN fold/broadcast matrices (one per unique (C, L))
    p_index = {}
    gb_rows = []          # packed gamma/beta rows (pre-broadcast along L)
    block_plan = []

    def p_idx_for(c, l):
        key = (c, l)
        if key not in p_index:
            p_index[key] = len(p_mats)
            p_mats.append(bn_fold_matrix(c, l, n_batch))
        return p_index[key]

    def add_gb(gamma, beta, l):
        r = len(gb_rows)
        gb_rows.append(np.repeat(np.asarray(gamma, np.float32), l))
        gb_rows.append(np.repeat(np.asarray(beta, np.float32), l))
        return r, r + 1

    for p in blocks:
        m1, l_mid = conv1d_toeplitz(p['w1'], p['l_in'], p['stride'], 1)
        m2, l_out = conv1d_toeplitz(p['w2'], l_mid, 1, 1)
        assert l_out == l_mid
        c = p['out_ch']
        d_out = c * l_mid
        # conv biases dropped: they cancel exactly under training-mode BatchNorm.
        meta = {'type': p['type'], 'd_out': d_out, 'p_idx': p_idx_for(c, l_mid)}
        if p['type'] == 'down':
            msc, l_sc = conv1d_toeplitz(p['wsc'], p['l_in'], p['stride'], 0)
            assert l_sc == l_mid
            m_fused = np.concatenate([m1, msc], axis=1)            # (Cin*Lin, 2*Cout*Lout)
            meta['m_idx'] = (len(conv_mats), len(conv_mats) + 1)
            conv_mats += [m_fused, m2]
            meta['p_fused'] = p_idx_for(2 * c, l_mid)
            g_f = np.concatenate([np.asarray(p['g1'], np.float32),
                                  np.asarray(p['gsc'], np.float32)])
            b_f = np.concatenate([np.asarray(p['be1'], np.float32),
                                  np.asarray(p['besc'], np.float32)])
            r0, r1 = add_gb(g_f, b_f, l_mid)
        else:
            meta['m_idx'] = (len(conv_mats), len(conv_mats) + 1)
            conv_mats += [m1, m2]
            r0, r1 = add_gb(p['g1'], p['be1'], l_mid)
        r2, r3 = add_gb(p['g2'], p['be2'], l_mid)
        meta['gb_rows'] = (r0, r1, r2, r3)
        block_plan.append(meta)

    max_d = max(len(r) for r in gb_rows)
    gb_pack = np.zeros((len(gb_rows), max_d), np.float32)
    for i, r in enumerate(gb_rows):
        gb_pack[i, :len(r)] = r

    # Classifier: hidden lane-padded to 128 multiple; output padded only to 8 (masked store).
    flat, hid = cls['w1'].shape
    out_dim = cls['w2'].shape[1]
    hid_pad = ((hid + 127) // 128) * 128
    out_pad = max(8, ((out_dim + 7) // 8) * 8)
    w1p = np.zeros((flat, hid_pad), np.float32); w1p[:, :hid] = np.asarray(cls['w1'])
    w2p = np.zeros((hid_pad, out_pad), np.float32); w2p[:hid, :out_dim] = np.asarray(cls['w2'])
    bcls = np.zeros((2, hid_pad), np.float32)
    bcls[0, :hid] = np.asarray(cls['b1'])
    bcls[1, :out_dim] = np.asarray(cls['b2'])

    flat_args = ([jnp.asarray(m, jnp.bfloat16) for m in conv_mats] +
                 [jnp.asarray(m, jnp.float32) for m in p_mats] +
                 [jnp.asarray(gb_pack),
                  jnp.asarray(w1p, jnp.bfloat16),   # dominant bytes -> bf16
                  jnp.asarray(bcls),
                  jnp.asarray(w2p, jnp.float32)])   # tiny once unpadded -> keep f32 for parity

    plan = {'blocks': block_plan, 'n_conv': len(conv_mats), 'n_p': len(p_mats),
            'hid_pad': hid_pad, 'out_pad': out_pad, 'out_dim': out_dim,
            'n_batch': n_batch}
    return {'flat_args': flat_args, 'plan': plan}


# ------------------------------- forward passes -------------------------------

def forward_pallas(x_ncl, net):
    plan = net['plan']
    n = x_ncl.shape[0]
    assert n == plan['n_batch'], "BN fold matrices were folded for a specific batch size"
    h = x_ncl.reshape(n, -1)  # (N, C*L), same ordering as torch Flatten of NCW
    args = [h] + list(net['flat_args'])
    kernel = make_fused_kernel(plan)
    out = pl.pallas_call(
        kernel,
        out_shape=jax.ShapeDtypeStruct((n, plan['out_pad']), jnp.float32),
        in_specs=[pl.BlockSpec(memory_space=pltpu.MemorySpace.VMEM)] * len(args),
        out_specs=pl.BlockSpec(memory_space=pltpu.MemorySpace.VMEM),
    )(*args)
    return out[:, :plan['out_dim']]


def forward_ref(x, blocks, cls):
    # Pure-JAX reference (NCW), mirrors the PyTorch forward in training-mode BN.
    def conv1d(x, w, b, stride, pad):
        y = lax.conv_general_dilated(x, w, (stride,), [(pad, pad)],
                                     dimension_numbers=('NCH', 'OIH', 'NCH'))
        return y + b[None, :, None]

    def bn(y, g, be):
        m = jnp.mean(y, axis=(0, 2), keepdims=True)
        v = jnp.mean(jnp.square(y - m), axis=(0, 2), keepdims=True)
        return (y - m) / jnp.sqrt(v + EPS) * g[None, :, None] + be[None, :, None]

    h = x
    for p in blocks:
        if p['type'] == 'down':
            idn = bn(conv1d(h, p['wsc'], p['bsc'], p['stride'], 0), p['gsc'], p['besc'])
        else:
            idn = h
        t = jax.nn.relu(bn(conv1d(h, p['w1'], p['b1'], p['stride'], 1), p['g1'], p['be1']))
        t = bn(conv1d(t, p['w2'], p['b2'], 1, 1), p['g2'], p['be2'])
        h = jax.nn.relu(t + idn)
    hf = h.reshape(h.shape[0], -1)
    hf = jax.nn.relu(hf @ cls['w1'] + cls['b1'])
    return hf @ cls['w2'] + cls['b2']


# ----------------------------------- main -------------------------------------

if __name__ == "__main__":
    hp = dict(hidden_blocks=1, layer_zero_depth=2, layer_scaler=1,
              window_size=16, normalization='batch', dropout_rate=0.0)
    input_channels, output_size, num_classes = 4, 5, 5
    n_batch = 8  # >= 8 rows: full sublane use; amortizes the identical weight DMA

    key = jax.random.PRNGKey(0)
    key, kx = jax.random.split(key)
    x = jax.random.normal(kx, (n_batch, input_channels, hp['window_size']), jnp.float32)

    blocks, cls = init_params(key, input_channels, output_size, hp)
    net = prepare_network(blocks, cls, n_batch)

    out = forward_pallas(x, net)
    out = jax.block_until_ready(out)

    ref = forward_ref(x, blocks, cls)
    np.testing.assert_allclose(np.asarray(out), np.asarray(ref), rtol=2e-2, atol=2e-2)

    print("KERNEL_OK")
</pallas_src>

<mosaic_0001>
module attributes {stable_mosaic.version = 11 : i64} {
  func.func @kernel(%arg0: memref<8x64xf32, #tpu.memory_space<vmem>>, %arg1: memref<64x128xbf16, #tpu.memory_space<vmem>>, %arg2: memref<64x64xbf16, #tpu.memory_space<vmem>>, %arg3: memref<64x64xbf16, #tpu.memory_space<vmem>>, %arg4: memref<64x64xbf16, #tpu.memory_space<vmem>>, %arg5: memref<64x64xf32, #tpu.memory_space<vmem>>, %arg6: memref<128x128xf32, #tpu.memory_space<vmem>>, %arg7: memref<8x128xf32, #tpu.memory_space<vmem>>, %arg8: memref<64x1024xbf16, #tpu.memory_space<vmem>>, %arg9: memref<2x1024xf32, #tpu.memory_space<vmem>>, %arg10: memref<1024x8xf32, #tpu.memory_space<vmem>>, %arg11: memref<8x8xf32, #tpu.memory_space<vmem>>) attributes {dimension_semantics = [], scalar_prefetch = 0 : i64, scratch_operands = 0 : i64, tpu.core_type = #tpu.core_type<tc>} {
    %c0 = arith.constant 0 : index
    %c0_0 = arith.constant 0 : index
    %0 = vector.load %arg0[%c0, %c0_0] : memref<8x64xf32, #tpu.memory_space<vmem>>, vector<8x64xf32>
    %c0_1 = arith.constant 0 : index
    %c0_2 = arith.constant 0 : index
    %1 = vector.load %arg1[%c0_1, %c0_2] : memref<64x128xbf16, #tpu.memory_space<vmem>>, vector<64x128xbf16>
    %2 = arith.truncf %0 : vector<8x64xf32> to vector<8x64xbf16>
    %cst = arith.constant dense<0.000000e+00> : vector<8x128xf32>
    %3 = tpu.matmul %2, %1, %cst {dimension_numbers = #tpu.dot_dimension_numbers<[1], [0], [0], [1], [0, 0, 1, 1], [], []>} : vector<8x64xbf16>, vector<64x128xbf16>, vector<8x128xf32> -> vector<8x128xf32>
    %c0_3 = arith.constant 0 : index
    %c0_4 = arith.constant 0 : index
    %4 = vector.load %arg6[%c0_3, %c0_4] : memref<128x128xf32, #tpu.memory_space<vmem>>, vector<128x128xf32>
    %c0_5 = arith.constant 0 : index
    %c0_6 = arith.constant 0 : index
    %5 = vector.load %arg7[%c0_5, %c0_6] : memref<8x128xf32, #tpu.memory_space<vmem>>, vector<1x128xf32>
    %c1 = arith.constant 1 : index
    %c0_7 = arith.constant 0 : index
    %6 = vector.load %arg7[%c1, %c0_7] : memref<8x128xf32, #tpu.memory_space<vmem>>, vector<1x128xf32>
    %cst_8 = arith.constant dense<0.000000e+00> : vector<128xf32>
    %7 = vector.multi_reduction <add>, %3, %cst_8 [0] : vector<8x128xf32> to vector<128xf32>
    %8 = vector.shape_cast %7 : vector<128xf32> to vector<1x128xf32>
    %9 = arith.mulf %3, %3 : vector<8x128xf32>
    %cst_9 = arith.constant dense<0.000000e+00> : vector<128xf32>
    %10 = vector.multi_reduction <add>, %9, %cst_9 [0] : vector<8x128xf32> to vector<128xf32>
    %11 = vector.shape_cast %10 : vector<128xf32> to vector<1x128xf32>
    %cst_10 = arith.constant dense<0.000000e+00> : vector<1x128xf32>
    %12 = tpu.matmul %8, %4, %cst_10 {dimension_numbers = #tpu.dot_dimension_numbers<[1], [0], [0], [1], [0, 0, 1, 1], [], []>} : vector<1x128xf32>, vector<128x128xf32>, vector<1x128xf32> -> vector<1x128xf32>
    %cst_11 = arith.constant dense<0.000000e+00> : vector<1x128xf32>
    %13 = tpu.matmul %11, %4, %cst_11 {dimension_numbers = #tpu.dot_dimension_numbers<[1], [0], [0], [1], [0, 0, 1, 1], [], []>} : vector<1x128xf32>, vector<128x128xf32>, vector<1x128xf32> -> vector<1x128xf32>
    %14 = arith.mulf %12, %12 : vector<1x128xf32>
    %15 = arith.subf %13, %14 : vector<1x128xf32>
    %cst_12 = arith.constant 9.99999974E-6 : f32
    %16 = vector.broadcast %cst_12 : f32 to vector<1x128xf32>
    %17 = arith.addf %15, %16 : vector<1x128xf32>
    %18 = math.rsqrt %17 : vector<1x128xf32>
    %19 = arith.mulf %5, %18 : vector<1x128xf32>
    %20 = arith.mulf %12, %19 : vector<1x128xf32>
    %21 = arith.subf %6, %20 : vector<1x128xf32>
    %22 = vector.broadcast %19 : vector<1x128xf32> to vector<8x128xf32>
    %23 = arith.mulf %3, %22 : vector<8x128xf32>
    %24 = vector.broadcast %21 : vector<1x128xf32> to vector<8x128xf32>
    %25 = arith.addf %23, %24 : vector<8x128xf32>
    %26 = vector.extract_strided_slice %25 {offsets = [0, 0], sizes = [8, 64], strides = [1, 1]} : vector<8x128xf32> to vector<8x64xf32>
    %cst_13 = arith.constant 0.000000e+00 : f32
    %27 = vector.broadcast %cst_13 : f32 to vector<8x64xf32>
    %28 = arith.maximumf %26, %27 : vector<8x64xf32>
    %29 = vector.extract_strided_slice %25 {offsets = [0, 64], sizes = [8, 64], strides = [1, 1]} : vector<8x128xf32> to vector<8x64xf32>
    %c0_14 = arith.constant 0 : index
    %c0_15 = arith.constant 0 : index
    %30 = vector.load %arg2[%c0_14, %c0_15] : memref<64x64xbf16, #tpu.memory_space<vmem>>, vector<64x64xbf16>
    %31 = arith.truncf %28 : vector<8x64xf32> to vector<8x64xbf16>
    %cst_16 = arith.constant dense<0.000000e+00> : vector<8x64xf32>
    %32 = tpu.matmul %31, %30, %cst_16 {dimension_numbers = #tpu.dot_dimension_numbers<[1], [0], [0], [1], [0, 0, 1, 1], [], []>} : vector<8x64xbf16>, vector<64x64xbf16>, vector<8x64xf32> -> vector<8x64xf32>
    %c0_17 = arith.constant 0 : index
    %c0_18 = arith.constant 0 : index
    %33 = vector.load %arg5[%c0_17, %c0_18] : memref<64x64xf32, #tpu.memory_space<vmem>>, vector<64x64xf32>
    %c2 = arith.constant 2 : index
    %c0_19 = arith.constant 0 : index
    %34 = vector.load %arg7[%c2, %c0_19] : memref<8x128xf32, #tpu.memory_space<vmem>>, vector<1x64xf32>
    %c3 = arith.constant 3 : index
    %c0_20 = arith.constant 0 : index
    %35 = vector.load %arg7[%c3, %c0_20] : memref<8x128xf32, #tpu.memory_space<vmem>>, vector<1x64xf32>
    %cst_21 = arith.constant dense<0.000000e+00> : vector<64xf32>
    %36 = vector.multi_reduction <add>, %32, %cst_21 [0] : vector<8x64xf32> to vector<64xf32>
    %37 = vector.shape_cast %36 : vector<64xf32> to vector<1x64xf32>
    %38 = arith.mulf %32, %32 : vector<8x64xf32>
    %cst_22 = arith.constant dense<0.000000e+00> : vector<64xf32>
    %39 = vector.multi_reduction <add>, %38, %cst_22 [0] : vector<8x64xf32> to vector<64xf32>
    %40 = vector.shape_cast %39 : vector<64xf32> to vector<1x64xf32>
    %cst_23 = arith.constant dense<0.000000e+00> : vector<1x64xf32>
    %41 = tpu.matmul %37, %33, %cst_23 {dimension_numbers = #tpu.dot_dimension_numbers<[1], [0], [0], [1], [0, 0, 1, 1], [], []>} : vector<1x64xf32>, vector<64x64xf32>, vector<1x64xf32> -> vector<1x64xf32>
    %cst_24 = arith.constant dense<0.000000e+00> : vector<1x64xf32>
    %42 = tpu.matmul %40, %33, %cst_24 {dimension_numbers = #tpu.dot_dimension_numbers<[1], [0], [0], [1], [0, 0, 1, 1], [], []>} : vector<1x64xf32>, vector<64x64xf32>, vector<1x64xf32> -> vector<1x64xf32>
    %43 = arith.mulf %41, %41 : vector<1x64xf32>
    %44 = arith.subf %42, %43 : vector<1x64xf32>
    %cst_25 = arith.constant 9.99999974E-6 : f32
    %45 = vector.broadcast %cst_25 : f32 to vector<1x64xf32>
    %46 = arith.addf %44, %45 : vector<1x64xf32>
    %47 = math.rsqrt %46 : vector<1x64xf32>
    %48 = arith.mulf %34, %47 : vector<1x64xf32>
    %49 = arith.mulf %41, %48 : vector<1x64xf32>
    %50 = arith.subf %35, %49 : vector<1x64xf32>
    %51 = vector.broadcast %48 : vector<1x64xf32> to vector<8x64xf32>
    %52 = arith.mulf %32, %51 : vector<8x64xf32>
    %53 = vector.broadcast %50 : vector<1x64xf32> to vector<8x64xf32>
    %54 = arith.addf %52, %53 : vector<8x64xf32>
    %55 = arith.addf %54, %29 : vector<8x64xf32>
    %cst_26 = arith.constant 0.000000e+00 : f32
    %56 = vector.broadcast %cst_26 : f32 to vector<8x64xf32>
    %57 = arith.maximumf %55, %56 : vector<8x64xf32>
    %c0_27 = arith.constant 0 : index
    %c0_28 = arith.constant 0 : index
    %58 = vector.load %arg3[%c0_27, %c0_28] : memref<64x64xbf16, #tpu.memory_space<vmem>>, vector<64x64xbf16>
    %59 = arith.truncf %57 : vector<8x64xf32> to vector<8x64xbf16>
    %cst_29 = arith.constant dense<0.000000e+00> : vector<8x64xf32>
    %60 = tpu.matmul %59, %58, %cst_29 {dimension_numbers = #tpu.dot_dimension_numbers<[1], [0], [0], [1], [0, 0, 1, 1], [], []>} : vector<8x64xbf16>, vector<64x64xbf16>, vector<8x64xf32> -> vector<8x64xf32>
    %c0_30 = arith.constant 0 : index
    %c0_31 = arith.constant 0 : index
    %61 = vector.load %arg5[%c0_30, %c0_31] : memref<64x64xf32, #tpu.memory_space<vmem>>, vector<64x64xf32>
    %c4 = arith.constant 4 : index
    %c0_32 = arith.constant 0 : index
    %62 = vector.load %arg7[%c4, %c0_32] : memref<8x128xf32, #tpu.memory_space<vmem>>, vector<1x64xf32>
    %c5 = arith.constant 5 : index
    %c0_33 = arith.constant 0 : index
    %63 = vector.load %arg7[%c5, %c0_33] : memref<8x128xf32, #tpu.memory_space<vmem>>, vector<1x64xf32>
    %cst_34 = arith.constant dense<0.000000e+00> : vector<64xf32>
    %64 = vector.multi_reduction <add>, %60, %cst_34 [0] : vector<8x64xf32> to vector<64xf32>
    %65 = vector.shape_cast %64 : vector<64xf32> to vector<1x64xf32>
    %66 = arith.mulf %60, %60 : vector<8x64xf32>
    %cst_35 = arith.constant dense<0.000000e+00> : vector<64xf32>
    %67 = vector.multi_reduction <add>, %66, %cst_35 [0] : vector<8x64xf32> to vector<64xf32>
    %68 = vector.shape_cast %67 : vector<64xf32> to vector<1x64xf32>
    %cst_36 = arith.constant dense<0.000000e+00> : vector<1x64xf32>
    %69 = tpu.matmul %65, %61, %cst_36 {dimension_numbers = #tpu.dot_dimension_numbers<[1], [0], [0], [1], [0, 0, 1, 1], [], []>} : vector<1x64xf32>, vector<64x64xf32>, vector<1x64xf32> -> vector<1x64xf32>
    %cst_37 = arith.constant dense<0.000000e+00> : vector<1x64xf32>
    %70 = tpu.matmul %68, %61, %cst_37 {dimension_numbers = #tpu.dot_dimension_numbers<[1], [0], [0], [1], [0, 0, 1, 1], [], []>} : vector<1x64xf32>, vector<64x64xf32>, vector<1x64xf32> -> vector<1x64xf32>
    %71 = arith.mulf %69, %69 : vector<1x64xf32>
    %72 = arith.subf %70, %71 : vector<1x64xf32>
    %cst_38 = arith.constant 9.99999974E-6 : f32
    %73 = vector.broadcast %cst_38 : f32 to vector<1x64xf32>
    %74 = arith.addf %72, %73 : vector<1x64xf32>
    %75 = math.rsqrt %74 : vector<1x64xf32>
    %76 = arith.mulf %62, %75 : vector<1x64xf32>
    %77 = arith.mulf %69, %76 : vector<1x64xf32>
    %78 = arith.subf %63, %77 : vector<1x64xf32>
    %79 = vector.broadcast %76 : vector<1x64xf32> to vector<8x64xf32>
    %80 = arith.mulf %60, %79 : vector<8x64xf32>
    %81 = vector.broadcast %78 : vector<1x64xf32> to vector<8x64xf32>
    %82 = arith.addf %80, %81 : vector<8x64xf32>
    %cst_39 = arith.constant 0.000000e+00 : f32
    %83 = vector.broadcast %cst_39 : f32 to vector<8x64xf32>
    %84 = arith.maximumf %82, %83 : vector<8x64xf32>
    %c0_40 = arith.constant 0 : index
    %c0_41 = arith.constant 0 : index
    %85 = vector.load %arg4[%c0_40, %c0_41] : memref<64x64xbf16, #tpu.memory_space<vmem>>, vector<64x64xbf16>
    %86 = arith.truncf %84 : vector<8x64xf32> to vector<8x64xbf16>
    %cst_42 = arith.constant dense<0.000000e+00> : vector<8x64xf32>
    %87 = tpu.matmul %86, %85, %cst_42 {dimension_numbers = #tpu.dot_dimension_numbers<[1], [0], [0], [1], [0, 0, 1, 1], [], []>} : vector<8x64xbf16>, vector<64x64xbf16>, vector<8x64xf32> -> vector<8x64xf32>
    %c0_43 = arith.constant 0 : index
    %c0_44 = arith.constant 0 : index
    %88 = vector.load %arg5[%c0_43, %c0_44] : memref<64x64xf32, #tpu.memory_space<vmem>>, vector<64x64xf32>
    %c6 = arith.constant 6 : index
    %c0_45 = arith.constant 0 : index
    %89 = vector.load %arg7[%c6, %c0_45] : memref<8x128xf32, #tpu.memory_space<vmem>>, vector<1x64xf32>
    %c7 = arith.constant 7 : index
    %c0_46 = arith.constant 0 : index
    %90 = vector.load %arg7[%c7, %c0_46] : memref<8x128xf32, #tpu.memory_space<vmem>>, vector<1x64xf32>
    %cst_47 = arith.constant dense<0.000000e+00> : vector<64xf32>
    %91 = vector.multi_reduction <add>, %87, %cst_47 [0] : vector<8x64xf32> to vector<64xf32>
    %92 = vector.shape_cast %91 : vector<64xf32> to vector<1x64xf32>
    %93 = arith.mulf %87, %87 : vector<8x64xf32>
    %cst_48 = arith.constant dense<0.000000e+00> : vector<64xf32>
    %94 = vector.multi_reduction <add>, %93, %cst_48 [0] : vector<8x64xf32> to vector<64xf32>
    %95 = vector.shape_cast %94 : vector<64xf32> to vector<1x64xf32>
    %cst_49 = arith.constant dense<0.000000e+00> : vector<1x64xf32>
    %96 = tpu.matmul %92, %88, %cst_49 {dimension_numbers = #tpu.dot_dimension_numbers<[1], [0], [0], [1], [0, 0, 1, 1], [], []>} : vector<1x64xf32>, vector<64x64xf32>, vector<1x64xf32> -> vector<1x64xf32>
    %cst_50 = arith.constant dense<0.000000e+00> : vector<1x64xf32>
    %97 = tpu.matmul %95, %88, %cst_50 {dimension_numbers = #tpu.dot_dimension_numbers<[1], [0], [0], [1], [0, 0, 1, 1], [], []>} : vector<1x64xf32>, vector<64x64xf32>, vector<1x64xf32> -> vector<1x64xf32>
    %98 = arith.mulf %96, %96 : vector<1x64xf32>
    %99 = arith.subf %97, %98 : vector<1x64xf32>
    %cst_51 = arith.constant 9.99999974E-6 : f32
    %100 = vector.broadcast %cst_51 : f32 to vector<1x64xf32>
    %101 = arith.addf %99, %100 : vector<1x64xf32>
    %102 = math.rsqrt %101 : vector<1x64xf32>
    %103 = arith.mulf %89, %102 : vector<1x64xf32>
    %104 = arith.mulf %96, %103 : vector<1x64xf32>
    %105 = arith.subf %90, %104 : vector<1x64xf32>
    %106 = vector.broadcast %103 : vector<1x64xf32> to vector<8x64xf32>
    %107 = arith.mulf %87, %106 : vector<8x64xf32>
    %108 = vector.broadcast %105 : vector<1x64xf32> to vector<8x64xf32>
    %109 = arith.addf %107, %108 : vector<8x64xf32>
    %110 = arith.addf %109, %57 : vector<8x64xf32>
    %cst_52 = arith.constant 0.000000e+00 : f32
    %111 = vector.broadcast %cst_52 : f32 to vector<8x64xf32>
    %112 = arith.maximumf %110, %111 : vector<8x64xf32>
    %113 = arith.truncf %112 : vector<8x64xf32> to vector<8x64xbf16>
    %c0_53 = arith.constant 0 : index
    %c0_54 = arith.constant 0 : index
    %114 = vector.load %arg8[%c0_53, %c0_54] : memref<64x1024xbf16, #tpu.memory_space<vmem>>, vector<64x1024xbf16>
    %cst_55 = arith.constant dense<0.000000e+00> : vector<8x1024xf32>
    %115 = tpu.matmul %113, %114, %cst_55 {dimension_numbers = #tpu.dot_dimension_numbers<[1], [0], [0], [1], [0, 0, 1, 1], [], []>} : vector<8x64xbf16>, vector<64x1024xbf16>, vector<8x1024xf32> -> vector<8x1024xf32>
    %c0_56 = arith.constant 0 : index
    %c0_57 = arith.constant 0 : index
    %116 = vector.load %arg9[%c0_56, %c0_57] : memref<2x1024xf32, #tpu.memory_space<vmem>>, vector<1x1024xf32>
    %117 = vector.broadcast %116 : vector<1x1024xf32> to vector<8x1024xf32>
    %118 = arith.addf %115, %117 : vector<8x1024xf32>
    %cst_58 = arith.constant 0.000000e+00 : f32
    %119 = vector.broadcast %cst_58 : f32 to vector<8x1024xf32>
    %120 = arith.maximumf %118, %119 : vector<8x1024xf32>
    %c0_59 = arith.constant 0 : index
    %c0_60 = arith.constant 0 : index
    %121 = vector.load %arg10[%c0_59, %c0_60] : memref<1024x8xf32, #tpu.memory_space<vmem>>, vector<1024x8xf32>
    %cst_61 = arith.constant dense<0.000000e+00> : vector<8x8xf32>
    %122 = tpu.matmul %120, %121, %cst_61 {dimension_numbers = #tpu.dot_dimension_numbers<[1], [0], [0], [1], [0, 0, 1, 1], [], []>} : vector<8x1024xf32>, vector<1024x8xf32>, vector<8x8xf32> -> vector<8x8xf32>
    %c1_62 = arith.constant 1 : index
    %c0_63 = arith.constant 0 : index
    %123 = vector.load %arg9[%c1_62, %c0_63] : memref<2x1024xf32, #tpu.memory_space<vmem>>, vector<1x8xf32>
    %124 = vector.broadcast %123 : vector<1x8xf32> to vector<8x8xf32>
    %125 = arith.addf %122, %124 : vector<8x8xf32>
    %c0_64 = arith.constant 0 : index
    %c0_65 = arith.constant 0 : index
    %126 = vector.load %arg11[%c0_64, %c0_65] : memref<8x8xf32, #tpu.memory_space<vmem>>, vector<8x8xf32>
    tpu.vector_store %arg11[%c0_64, %c0_65], %125 {strides = array<i32>} : memref<8x8xf32, #tpu.memory_space<vmem>>, vector<8x8xf32>,
    return
  }
}

</mosaic_0001>

<llo_original>
// kernel: tpu_custom_call.1
$region0: #{tpu_custom_call.1}
  #allocation0 [shape = 'u32[]', space=smem, size = 0x4, offset = 0x4, fixed_abs, tag = 'smem constant byte address 0x4 - core index']
  #allocation1 [shape = 'u32[144,128]{1,0:T(1,128)}', space=vmem, size = 0x12000, scoped, tag = 'internal scratch']
  %s0 = inlined_call_operand.vmem [shape: f32[8,64], index: 0, kind: input, shape index: {}]
  %s1 = inlined_call_operand.vmem [shape: bf16[64,128], index: 1, kind: input, shape index: {}]
  %s2 = inlined_call_operand.vmem [shape: bf16[64,64], index: 2, kind: input, shape index: {}]
  %s3 = inlined_call_operand.vmem [shape: bf16[64,64], index: 3, kind: input, shape index: {}]
  %s4 = inlined_call_operand.vmem [shape: bf16[64,64], index: 4, kind: input, shape index: {}]
  %s5 = inlined_call_operand.vmem [shape: f32[64,64], index: 5, kind: input, shape index: {}]
  %s6 = inlined_call_operand.vmem [shape: f32[128,128], index: 6, kind: input, shape index: {}]
  %s7 = inlined_call_operand.vmem [shape: f32[8,128], index: 7, kind: input, shape index: {}]
  %s8 = inlined_call_operand.vmem [shape: bf16[64,1024], index: 8, kind: input, shape index: {}]
  %s9 = inlined_call_operand.vmem [shape: f32[2,1024], index: 9, kind: input, shape index: {}]
  %s10 = inlined_call_operand.vmem [shape: f32[1024,8], index: 10, kind: input, shape index: {}]
  %s11 = inlined_call_operand.hbm [shape: f32[8,8], index: 11, kind: output, shape index: {}]
  %s12 = sld [smem:[#allocation0]]
  $region54: #{tpu_custom_call.1} parent=0
    _
  %s14 = ssub.s32 1, %s12
  %s15 = scalar_select 0, %s14, %s12
  $region1: #{tpu_custom_call.1} parent=0
    #allocation2 [shape = 'u8[4096]{0}', space=vmem, size = 0x1000, scoped, tag = 'output window, operand 0, single buffered']
    #allocation3 [shape = 's32[1]{0}', space=sflag, size = 0x4, scoped, tag = 'scoped memory for tpu_custom_call.1']
    %16 = vsyncpa [#allocation3], 0
    // Predicated region
    $region2: #{tpu_custom_call.1} parent=1 // pred_check
      _
    $region3: #{tpu_custom_call.1} parent=1 // pred_check_branch
      %18 = sbr.rel (0) target = $region5
    $region4: #{tpu_custom_call.1} parent=1 // pred_region
      _
    $region5: #{tpu_custom_call.1} parent=1 // pred_fallthru
      _
    // Predicated region
    $region6: #{tpu_custom_call.1} parent=1 // pred_check
      _
    $region7: #{tpu_custom_call.1} parent=1 // pred_check_branch
      %20 = sbr.rel (0) target = $region9
    $region8: #{tpu_custom_call.1} parent=1 // pred_region
      _
    $region9: #{tpu_custom_call.1} parent=1 // pred_fallthru
      _
    // Predicated region
    $region10: #{tpu_custom_call.1} parent=1 // pred_check
      _
    $region11: #{tpu_custom_call.1} parent=1 // pred_check_branch
      %22 = sbr.rel (0) target = $region13
    $region12: #{tpu_custom_call.1} parent=1 // pred_region
      _
    $region13: #{tpu_custom_call.1} parent=1 // pred_fallthru
      _
    // Predicated region
    $region14: #{tpu_custom_call.1} parent=1 // pred_check
      _
    $region15: #{tpu_custom_call.1} parent=1 // pred_check_branch
      %24 = sbr.rel (0) target = $region17
    $region16: #{tpu_custom_call.1} parent=1 // pred_region
      _
    $region17: #{tpu_custom_call.1} parent=1 // pred_fallthru
      _
    // Predicated region
    $region18: #{tpu_custom_call.1} parent=1 // pred_check
      _
    $region19: #{tpu_custom_call.1} parent=1 // pred_check_branch
      %26 = sbr.rel (0) target = $region21
    $region20: #{tpu_custom_call.1} parent=1 // pred_region
      _
    $region21: #{tpu_custom_call.1} parent=1 // pred_fallthru
      _
    // Predicated region
    $region22: #{tpu_custom_call.1} parent=1 // pred_check
      _
    $region23: #{tpu_custom_call.1} parent=1 // pred_check_branch
      %28 = sbr.rel (0) target = $region25
    $region24: #{tpu_custom_call.1} parent=1 // pred_region
      _
    $region25: #{tpu_custom_call.1} parent=1 // pred_fallthru
      _
    // Predicated region
    $region26: #{tpu_custom_call.1} parent=1 // pred_check
      _
    $region27: #{tpu_custom_call.1} parent=1 // pred_check_branch
      %30 = sbr.rel (0) target = $region29
    $region28: #{tpu_custom_call.1} parent=1 // pred_region
      _
    $region29: #{tpu_custom_call.1} parent=1 // pred_fallthru
      _
    // Predicated region
    $region30: #{tpu_custom_call.1} parent=1 // pred_check
      _
    $region31: #{tpu_custom_call.1} parent=1 // pred_check_branch
      %32 = sbr.rel (0) target = $region33
    $region32: #{tpu_custom_call.1} parent=1 // pred_region
      _
    $region33: #{tpu_custom_call.1} parent=1 // pred_fallthru
      _
    // Predicated region
    $region34: #{tpu_custom_call.1} parent=1 // pred_check
      _
    $region35: #{tpu_custom_call.1} parent=1 // pred_check_branch
      %34 = sbr.rel (0) target = $region37
    $region36: #{tpu_custom_call.1} parent=1 // pred_region
      _
    $region37: #{tpu_custom_call.1} parent=1 // pred_fallthru
      _
    // Predicated region
    $region38: #{tpu_custom_call.1} parent=1 // pred_check
      _
    $region39: #{tpu_custom_call.1} parent=1 // pred_check_branch
      %36 = sbr.rel (0) target = $region41
    $region40: #{tpu_custom_call.1} parent=1 // pred_region
      _
    $region41: #{tpu_custom_call.1} parent=1 // pred_fallthru
      _
    // Predicated region
    $region42: #{tpu_custom_call.1} parent=1 // pred_check
      _
    $region43: #{tpu_custom_call.1} parent=1 // pred_check_branch
      %38 = sbr.rel (0) target = $region45
    $region44: #{tpu_custom_call.1} parent=1 // pred_region
      _
    $region45: #{tpu_custom_call.1} parent=1 // pred_fallthru
      _
    %v40 = vld [vmem:[%s0] sm:$0xff]
    %v41 = vld [vmem:[%s1] sm:$0xf]
    %v42 = vld [vmem:[%s1 + $0x4] sm:$0xf]
    %v43 = vld [vmem:[%s1 + $0x8] sm:$0xf]
    %v44 = vld [vmem:[%s1 + $0xc] sm:$0xf]
    %v45 = vld [vmem:[%s1 + $0x10] sm:$0xf]
    %v46 = vld [vmem:[%s1 + $0x14] sm:$0xf]
    %v47 = vld [vmem:[%s1 + $0x18] sm:$0xf]
    %v48 = vld [vmem:[%s1 + $0x1c] sm:$0xf]
    %v49 = vpack.c.bf16 %v40, %v40
    %v58 = vunpack.c.l.b16 %v41
    %v59 = vunpack.c.l.b16 %v42
    %v60 = vunpack.c.l.b16 %v43
    %v61 = vunpack.c.l.b16 %v44
    %v62 = vunpack.c.l.b16 %v45
    %v63 = vunpack.c.l.b16 %v46
    %v64 = vunpack.c.l.b16 %v47
    %v65 = vunpack.c.l.b16 %v48
    %v66 = vpack.c.b16 %v59, %v58
    %v67 = vpack.c.b16 %v61, %v60
    %v68 = vpack.c.b16 %v63, %v62
    %v69 = vpack.c.b16 %v65, %v64
    %vm74 = vcmask 523264
    %v76 = vsel %vm74, %v49, 0
    %78 = vmatprep.subr.bf16.mxu0 0
    %79 = vmatpush1.bf16.msra.mxu0 %v66
    %80 = vmatprep.subr.bf16.mxu0 0
    %81 = vmatpush1.bf16.msra.mxu0 %v67
    %82 = vmatprep.subr.bf16.mxu0 0
    %83 = vmatpush1.bf16.msra.mxu0 %v68
    %84 = vmatprep.subr.bf16.mxu0 0
    %85 = vmatpush1.bf16.msra.mxu0 %v69
    %86 = vmatprep.subr.bf16.mxu0 0
    %87 = vmatpush1.bf16.msra.mxu0 0
    %88 = vmatprep.subr.bf16.mxu0 0
    %89 = vmatpush1.bf16.msra.mxu0 0
    %90 = vmatprep.subr.bf16.mxu0 0
    %91 = vmatpush1.bf16.msra.mxu0 0
    %92 = vmatprep.subr.bf16.mxu0 0
    %93 = vmatpush1.bf16.msra.mxu0 0
    %94 = vmatprep.subr.bf16.mxu0 0
    %95 = vmatpush1.bf16.msra.mxu0 0
    %96 = vmatprep.subr.bf16.mxu0 0
    %97 = vmatpush1.bf16.msra.mxu0 0
    %98 = vmatprep.subr.bf16.mxu0 0
    %99 = vmatpush1.bf16.msra.mxu0 0
    %100 = vmatprep.subr.bf16.mxu0 0
    %101 = vmatpush1.bf16.msra.mxu0 0
    %102 = vmatprep.subr.bf16.mxu0 0
    %103 = vmatpush1.bf16.msra.mxu0 0
    %104 = vmatprep.subr.bf16.mxu0 0
    %105 = vmatpush1.bf16.msra.mxu0 0
    %106 = vmatprep.subr.bf16.mxu0 0
    %107 = vmatpush1.bf16.msra.mxu0 0
    %108 = vmatprep.subr.bf16.mxu0 0
    %109 = vmatpush1.bf16.msra.mxu0 0
    %110 = vmatprep.mubr.bf16.mxu0 0
    %111 = vmatmul.mubr.bf16.gmra.mrb[0].mxu0 %v76
    %v112 = vpop.f32.mrb[0].mxu0
    %v113 = vadd.f32 0.0, %v112
    %v114 = vpop.f32.mrb[0].mxu0
    %v115 = vpop.f32.mrb[0].mxu0
    %v116 = vpop.f32.mrb[0].mxu0
    %117 = vdwg.mxu0
    %v118 = vld [vmem:[%s6] sm:$0xff]
    %v119 = vld [vmem:[%s6 + $0x8] sm:$0xff]
    %v120 = vld [vmem:[%s6 + $0x10] sm:$0xff]
    %v121 = vld [vmem:[%s6 + $0x18] sm:$0xff]
    %v122 = vld [vmem:[%s6 + $0x20] sm:$0xff]
    %v123 = vld [vmem:[%s6 + $0x28] sm:$0xff]
    %v124 = vld [vmem:[%s6 + $0x30] sm:$0xff]
    %v125 = vld [vmem:[%s6 + $0x38] sm:$0xff]
    %v126 = vld [vmem:[%s6 + $0x40] sm:$0xff]
    %v127 = vld [vmem:[%s6 + $0x48] sm:$0xff]
    %v128 = vld [vmem:[%s6 + $0x50] sm:$0xff]
    %v129 = vld [vmem:[%s6 + $0x58] sm:$0xff]
    %v130 = vld [vmem:[%s6 + $0x60] sm:$0xff]
    %v131 = vld [vmem:[%s6 + $0x68] sm:$0xff]
    %v132 = vld [vmem:[%s6 + $0x70] sm:$0xff]
    %v133 = vld [vmem:[%s6 + $0x78] sm:$0xff]
    %v134 = vld [vmem:[%s7] sm:$0x1]
    %v135 = vld [vmem:[%s7 + $0x1] sm:$0x1]
    %v136 = vrot.slane %v113, 4
    %v137 = vadd.f32 %v113, %v136
    %v138 = vrot.slane %v137, 2
    %v139 = vadd.f32 %v137, %v138
    %v140 = vrot.slane %v139, 1
    %v141 = vadd.f32 %v139, %v140
    %v142 = vmul.f32 %v113, %v113
    %v143 = vrot.slane %v142, 4
    %v144 = vadd.f32 %v142, %v143
    %v145 = vrot.slane %v144, 2
    %v146 = vadd.f32 %v144, %v145
    %v147 = vrot.slane %v146, 1
    %v148 = vadd.f32 %v146, %v147
    %149 = vmatprep.subr.mxu0 0.0
    %150 = vmatpush1.msra.mxu0 %v118
    %151 = vmatprep.subr.mxu0 0.0
    %152 = vmatpush1.msra.mxu0 %v119
    %153 = vmatprep.subr.mxu0 0.0
    %154 = vmatpush1.msra.mxu0 %v120
    %155 = vmatprep.subr.mxu0 0.0
    %156 = vmatpush1.msra.mxu0 %v121
    %157 = vmatprep.subr.mxu0 0.0
    %158 = vmatpush1.msra.mxu0 %v122
    %159 = vmatprep.subr.mxu0 0.0
    %160 = vmatpush1.msra.mxu0 %v123
    %161 = vmatprep.subr.mxu0 0.0
    %162 = vmatpush1.msra.mxu0 %v124
    %163 = vmatprep.subr.mxu0 0.0
    %164 = vmatpush1.msra.mxu0 %v125
    %165 = vmatprep.subr.mxu0 0.0
    %166 = vmatpush1.msra.mxu0 %v126
    %167 = vmatprep.subr.mxu0 0.0
    %168 = vmatpush1.msra.mxu0 %v127
    %169 = vmatprep.subr.mxu0 0.0
    %170 = vmatpush1.msra.mxu0 %v128
    %171 = vmatprep.subr.mxu0 0.0
    %172 = vmatpush1.msra.mxu0 %v129
    %173 = vmatprep.subr.mxu0 0.0
    %174 = vmatpush1.msra.mxu0 %v130
    %175 = vmatprep.subr.mxu0 0.0
    %176 = vmatpush1.msra.mxu0 %v131
    %177 = vmatprep.subr.mxu0 0.0
    %178 = vmatpush1.msra.mxu0 %v132
    %179 = vmatprep.subr.mxu0 0.0
    %180 = vmatpush1.msra.mxu0 %v133
    %181 = vmatprep.subr.mxu0 0.0
    %182 = vmatpush1.msra.mxu0 0.0
    %183 = vmatprep.subr.mxu0 0.0
    %184 = vmatpush1.msra.mxu0 0.0
    %185 = vmatprep.subr.mxu0 0.0
    %186 = vmatpush1.msra.mxu0 0.0
    %187 = vmatprep.subr.mxu0 0.0
    %188 = vmatpush1.msra.mxu0 0.0
    %189 = vmatprep.subr.mxu0 0.0
    %190 = vmatpush1.msra.mxu0 0.0
    %191 = vmatprep.subr.mxu0 0.0
    %192 = vmatpush1.msra.mxu0 0.0
    %193 = vmatprep.subr.mxu0 0.0
    %194 = vmatpush1.msra.mxu0 0.0
    %195 = vmatprep.subr.mxu0 0.0
    %196 = vmatpush1.msra.mxu0 0.0
    %197 = vmatprep.subr.mxu0 0.0
    %198 = vmatpush1.msra.mxu0 0.0
    %199 = vmatprep.subr.mxu0 0.0
    %200 = vmatpush1.msra.mxu0 0.0
    %201 = vmatprep.subr.mxu0 0.0
    %202 = vmatpush1.msra.mxu0 0.0
    %203 = vmatprep.subr.mxu0 0.0
    %204 = vmatpush1.msra.mxu0 0.0
    %205 = vmatprep.subr.mxu0 0.0
    %206 = vmatpush1.msra.mxu0 0.0
    %207 = vmatprep.subr.mxu0 0.0
    %208 = vmatpush1.msra.mxu0 0.0
    %209 = vmatprep.subr.mxu0 0.0
    %210 = vmatpush1.msra.mxu0 0.0
    %211 = vmatprep.subr.mxu0 0.0
    %212 = vmatpush1.msra.mxu0 0.0
    %213 = vmatprep.mubr.f32.mxu0 0.0
    %214 = vmatmul.mubr.f32.gmra.mrb[0].mxu0 %v141
    %v215 = vpop.f32.mrb[0].mxu0
    %v216 = vadd.f32 0.0, %v215
    %v217 = vpop.f32.mrb[0].mxu0
    %218 = vdwg.mxu0
    %219 = vmatprep.subr.mxu0 0.0
    %220 = vmatpush1.msra.mxu0 %v118
    %221 = vmatprep.subr.mxu0 0.0
    %222 = vmatpush1.msra.mxu0 %v119
    %223 = vmatprep.subr.mxu0 0.0
    %224 = vmatpush1.msra.mxu0 %v120
    %225 = vmatprep.subr.mxu0 0.0
    %226 = vmatpush1.msra.mxu0 %v121
    %227 = vmatprep.subr.mxu0 0.0
    %228 = vmatpush1.msra.mxu0 %v122
    %229 = vmatprep.subr.mxu0 0.0
    %230 = vmatpush1.msra.mxu0 %v123
    %231 = vmatprep.subr.mxu0 0.0
    %232 = vmatpush1.msra.mxu0 %v124
    %233 = vmatprep.subr.mxu0 0.0
    %234 = vmatpush1.msra.mxu0 %v125
    %235 = vmatprep.subr.mxu0 0.0
    %236 = vmatpush1.msra.mxu0 %v126
    %237 = vmatprep.subr.mxu0 0.0
    %238 = vmatpush1.msra.mxu0 %v127
    %239 = vmatprep.subr.mxu0 0.0
    %240 = vmatpush1.msra.mxu0 %v128
    %241 = vmatprep.subr.mxu0 0.0
    %242 = vmatpush1.msra.mxu0 %v129
    %243 = vmatprep.subr.mxu0 0.0
    %244 = vmatpush1.msra.mxu0 %v130
    %245 = vmatprep.subr.mxu0 0.0
    %246 = vmatpush1.msra.mxu0 %v131
    %247 = vmatprep.subr.mxu0 0.0
    %248 = vmatpush1.msra.mxu0 %v132
    %249 = vmatprep.subr.mxu0 0.0
    %250 = vmatpush1.msra.mxu0 %v133
    %251 = vmatprep.subr.mxu0 0.0
    %252 = vmatpush1.msra.mxu0 0.0
    %253 = vmatprep.subr.mxu0 0.0
    %254 = vmatpush1.msra.mxu0 0.0
    %255 = vmatprep.subr.mxu0 0.0
    %256 = vmatpush1.msra.mxu0 0.0
    %257 = vmatprep.subr.mxu0 0.0
    %258 = vmatpush1.msra.mxu0 0.0
    %259 = vmatprep.subr.mxu0 0.0
    %260 = vmatpush1.msra.mxu0 0.0
    %261 = vmatprep.subr.mxu0 0.0
    %262 = vmatpush1.msra.mxu0 0.0
    %263 = vmatprep.subr.mxu0 0.0
    %264 = vmatpush1.msra.mxu0 0.0
    %265 = vmatprep.subr.mxu0 0.0
    %266 = vmatpush1.msra.mxu0 0.0
    %267 = vmatprep.subr.mxu0 0.0
    %268 = vmatpush1.msra.mxu0 0.0
    %269 = vmatprep.subr.mxu0 0.0
    %270 = vmatpush1.msra.mxu0 0.0
    %271 = vmatprep.subr.mxu0 0.0
    %272 = vmatpush1.msra.mxu0 0.0
    %273 = vmatprep.subr.mxu0 0.0
    %274 = vmatpush1.msra.mxu0 0.0
    %275 = vmatprep.subr.mxu0 0.0
    %276 = vmatpush1.msra.mxu0 0.0
    %277 = vmatprep.subr.mxu0 0.0
    %278 = vmatpush1.msra.mxu0 0.0
    %279 = vmatprep.subr.mxu0 0.0
    %280 = vmatpush1.msra.mxu0 0.0
    %281 = vmatprep.subr.mxu0 0.0
    %282 = vmatpush1.msra.mxu0 0.0
    %283 = vmatprep.mubr.f32.mxu0 0.0
    %284 = vmatmul.mubr.f32.gmra.mrb[0].mxu0 %v148
    %v285 = vpop.f32.mrb[0].mxu0
    %v286 = vadd.f32 0.0, %v285
    %v287 = vpop.f32.mrb[0].mxu0
    %288 = vdwg.mxu0
    %v289 = vmul.f32 %v216, %v216
    %v290 = vsub.f32 %v286, %v289
    %v291 = vadd.f32 %v290, 1e-05
    %v292 = vrsqrt.pop %v291
    %v293 = vmul.f32 %v134, %v292
    %v294 = vmul.f32 %v216, %v293
    %v295 = vsub.f32 %v135, %v294
    %v296 = vlaneseq
    %v297 = vshrl.u32 %v296, 7
    %v298 = vsub.s32 0, %v297
    %v299 = vrot.slane %v293, %v298
    %v300 = vmul.f32 %v113, %v299
    %v301 = vlaneseq
    %v302 = vshrl.u32 %v301, 7
    %v303 = vsub.s32 0, %v302
    %v304 = vrot.slane %v295, %v303
    %v305 = vadd.f32 %v300, %v304
    %v306 = vmax.f32 %v305, 0.0
    %v307 = vld [vmem:[%s2] sm:$0xf]
    %v308 = vld [vmem:[%s2 + $0x4] sm:$0xf]
    %v309 = vld [vmem:[%s2 + $0x8] sm:$0xf]
    %v310 = vld [vmem:[%s2 + $0xc] sm:$0xf]
    %v311 = vld [vmem:[%s2 + $0x10] sm:$0xf]
    %v312 = vld [vmem:[%s2 + $0x14] sm:$0xf]
    %v313 = vld [vmem:[%s2 + $0x18] sm:$0xf]
    %v314 = vld [vmem:[%s2 + $0x1c] sm:$0xf]
    %v315 = vpack.c.bf16 %v306, %v306
    %v324 = vunpack.c.l.b16 %v307
    %v325 = vunpack.c.l.b16 %v308
    %v326 = vunpack.c.l.b16 %v309
    %v327 = vunpack.c.l.b16 %v310
    %v328 = vunpack.c.l.b16 %v311
    %v329 = vunpack.c.l.b16 %v312
    %v330 = vunpack.c.l.b16 %v313
    %v331 = vunpack.c.l.b16 %v314
    %v332 = vpack.c.b16 %v325, %v324
    %v333 = vpack.c.b16 %v327, %v326
    %v334 = vpack.c.b16 %v329, %v328
    %v335 = vpack.c.b16 %v331, %v330
    %v341 = vsel %vm74, %v315, 0
    %343 = vmatprep.subr.bf16.mxu0 0
    %344 = vmatpush1.bf16.msra.mxu0 %v332
    %345 = vmatprep.subr.bf16.mxu0 0
    %346 = vmatpush1.bf16.msra.mxu0 %v333
    %347 = vmatprep.subr.bf16.mxu0 0
    %348 = vmatpush1.bf16.msra.mxu0 %v334
    %349 = vmatprep.subr.bf16.mxu0 0
    %350 = vmatpush1.bf16.msra.mxu0 %v335
    %351 = vmatprep.subr.bf16.mxu0 0
    %352 = vmatpush1.bf16.msra.mxu0 0
    %353 = vmatprep.subr.bf16.mxu0 0
    %354 = vmatpush1.bf16.msra.mxu0 0
    %355 = vmatprep.subr.bf16.mxu0 0
    %356 = vmatpush1.bf16.msra.mxu0 0
    %357 = vmatprep.subr.bf16.mxu0 0
    %358 = vmatpush1.bf16.msra.mxu0 0
    %359 = vmatprep.subr.bf16.mxu0 0
    %360 = vmatpush1.bf16.msra.mxu0 0
    %361 = vmatprep.subr.bf16.mxu0 0
    %362 = vmatpush1.bf16.msra.mxu0 0
    %363 = vmatprep.subr.bf16.mxu0 0
    %364 = vmatpush1.bf16.msra.mxu0 0
    %365 = vmatprep.subr.bf16.mxu0 0
    %366 = vmatpush1.bf16.msra.mxu0 0
    %367 = vmatprep.subr.bf16.mxu0 0
    %368 = vmatpush1.bf16.msra.mxu0 0
    %369 = vmatprep.subr.bf16.mxu0 0
    %370 = vmatpush1.bf16.msra.mxu0 0
    %371 = vmatprep.subr.bf16.mxu0 0
    %372 = vmatpush1.bf16.msra.mxu0 0
    %373 = vmatprep.subr.bf16.mxu0 0
    %374 = vmatpush1.bf16.msra.mxu0 0
    %375 = vmatprep.mubr.bf16.mxu0 0
    %376 = vmatmul.mubr.bf16.gmra.mrb[0].mxu0 %v341
    %v377 = vpop.f32.mrb[0].mxu0
    %v378 = vadd.f32 0.0, %v377
    %v379 = vpop.f32.mrb[0].mxu0
    %v380 = vpop.f32.mrb[0].mxu0
    %v381 = vpop.f32.mrb[0].mxu0
    %382 = vdwg.mxu0
    %v383 = vld [vmem:[%s5] sm:$0xff]
    %v384 = vld [vmem:[%s5 + $0x8] sm:$0xff]
    %v385 = vld [vmem:[%s5 + $0x10] sm:$0xff]
    %v386 = vld [vmem:[%s5 + $0x18] sm:$0xff]
    %v387 = vld [vmem:[%s5 + $0x20] sm:$0xff]
    %v388 = vld [vmem:[%s5 + $0x28] sm:$0xff]
    %v389 = vld [vmem:[%s5 + $0x30] sm:$0xff]
    %v390 = vld [vmem:[%s5 + $0x38] sm:$0xff]
    %v391 = vld [vmem:[%s7 + $0x2] sm:$0x1]
    %v392 = vld [vmem:[%s7 + $0x3] sm:$0x1]
    %v393 = vsel %vm74, %v378, 0.0
    %v394 = vrot.slane %v393, 4
    %v395 = vadd.f32 %v393, %v394
    %v396 = vrot.slane %v395, 2
    %v397 = vadd.f32 %v395, %v396
    %v398 = vrot.slane %v397, 1
    %v399 = vadd.f32 %v397, %v398
    %v400 = vmul.f32 %v378, %v378
    %v401 = vsel %vm74, %v400, 0.0
    %v402 = vrot.slane %v401, 4
    %v403 = vadd.f32 %v401, %v402
    %v404 = vrot.slane %v403, 2
    %v405 = vadd.f32 %v403, %v404
    %v406 = vrot.slane %v405, 1
    %v407 = vadd.f32 %v405, %v406
    %v409 = vsel %vm74, %v399, 0
    %411 = vmatprep.subr.mxu0 0.0
    %412 = vmatpush1.msra.mxu0 %v383
    %413 = vmatprep.subr.mxu0 0.0
    %414 = vmatpush1.msra.mxu0 %v384
    %415 = vmatprep.subr.mxu0 0.0
    %416 = vmatpush1.msra.mxu0 %v385
    %417 = vmatprep.subr.mxu0 0.0
    %418 = vmatpush1.msra.mxu0 %v386
    %419 = vmatprep.subr.mxu0 0.0
    %420 = vmatpush1.msra.mxu0 %v387
    %421 = vmatprep.subr.mxu0 0.0
    %422 = vmatpush1.msra.mxu0 %v388
    %423 = vmatprep.subr.mxu0 0.0
    %424 = vmatpush1.msra.mxu0 %v389
    %425 = vmatprep.subr.mxu0 0.0
    %426 = vmatpush1.msra.mxu0 %v390
    %427 = vmatprep.subr.mxu0 0.0
    %428 = vmatpush1.msra.mxu0 0.0
    %429 = vmatprep.subr.mxu0 0.0
    %430 = vmatpush1.msra.mxu0 0.0
    %431 = vmatprep.subr.mxu0 0.0
    %432 = vmatpush1.msra.mxu0 0.0
    %433 = vmatprep.subr.mxu0 0.0
    %434 = vmatpush1.msra.mxu0 0.0
    %435 = vmatprep.subr.mxu0 0.0
    %436 = vmatpush1.msra.mxu0 0.0
    %437 = vmatprep.subr.mxu0 0.0
    %438 = vmatpush1.msra.mxu0 0.0
    %439 = vmatprep.subr.mxu0 0.0
    %440 = vmatpush1.msra.mxu0 0.0
    %441 = vmatprep.subr.mxu0 0.0
    %442 = vmatpush1.msra.mxu0 0.0
    %443 = vmatprep.subr.mxu0 0.0
    %444 = vmatpush1.msra.mxu0 0.0
    %445 = vmatprep.subr.mxu0 0.0
    %446 = vmatpush1.msra.mxu0 0.0
    %447 = vmatprep.subr.mxu0 0.0
    %448 = vmatpush1.msra.mxu0 0.0
    %449 = vmatprep.subr.mxu0 0.0
    %450 = vmatpush1.msra.mxu0 0.0
    %451 = vmatprep.subr.mxu0 0.0
    %452 = vmatpush1.msra.mxu0 0.0
    %453 = vmatprep.subr.mxu0 0.0
    %454 = vmatpush1.msra.mxu0 0.0
    %455 = vmatprep.subr.mxu0 0.0
    %456 = vmatpush1.msra.mxu0 0.0
    %457 = vmatprep.subr.mxu0 0.0
    %458 = vmatpush1.msra.mxu0 0.0
    %459 = vmatprep.subr.mxu0 0.0
    %460 = vmatpush1.msra.mxu0 0.0
    %461 = vmatprep.subr.mxu0 0.0
    %462 = vmatpush1.msra.mxu0 0.0
    %463 = vmatprep.subr.mxu0 0.0
    %464 = vmatpush1.msra.mxu0 0.0
    %465 = vmatprep.subr.mxu0 0.0
    %466 = vmatpush1.msra.mxu0 0.0
    %467 = vmatprep.subr.mxu0 0.0
    %468 = vmatpush1.msra.mxu0 0.0
    %469 = vmatprep.subr.mxu0 0.0
    %470 = vmatpush1.msra.mxu0 0.0
    %471 = vmatprep.subr.mxu0 0.0
    %472 = vmatpush1.msra.mxu0 0.0
    %473 = vmatprep.subr.mxu0 0.0
    %474 = vmatpush1.msra.mxu0 0.0
    %475 = vmatprep.mubr.f32.mxu0 0.0
    %476 = vmatmul.mubr.f32.gmra.mrb[0].mxu0 %v409
    %v477 = vpop.f32.mrb[0].mxu0
    %v478 = vadd.f32 0.0, %v477
    %v479 = vpop.f32.mrb[0].mxu0
    %480 = vdwg.mxu0
    %v482 = vsel %vm74, %v407, 0
    %484 = vmatprep.subr.mxu0 0.0
    %485 = vmatpush1.msra.mxu0 %v383
    %486 = vmatprep.subr.mxu0 0.0
    %487 = vmatpush1.msra.mxu0 %v384
    %488 = vmatprep.subr.mxu0 0.0
    %489 = vmatpush1.msra.mxu0 %v385
    %490 = vmatprep.subr.mxu0 0.0
    %491 = vmatpush1.msra.mxu0 %v386
    %492 = vmatprep.subr.mxu0 0.0
    %493 = vmatpush1.msra.mxu0 %v387
    %494 = vmatprep.subr.mxu0 0.0
    %495 = vmatpush1.msra.mxu0 %v388
    %496 = vmatprep.subr.mxu0 0.0
    %497 = vmatpush1.msra.mxu0 %v389
    %498 = vmatprep.subr.mxu0 0.0
    %499 = vmatpush1.msra.mxu0 %v390
    %500 = vmatprep.subr.mxu0 0.0
    %501 = vmatpush1.msra.mxu0 0.0
    %502 = vmatprep.subr.mxu0 0.0
    %503 = vmatpush1.msra.mxu0 0.0
    %504 = vmatprep.subr.mxu0 0.0
    %505 = vmatpush1.msra.mxu0 0.0
    %506 = vmatprep.subr.mxu0 0.0
    %507 = vmatpush1.msra.mxu0 0.0
    %508 = vmatprep.subr.mxu0 0.0
    %509 = vmatpush1.msra.mxu0 0.0
    %510 = vmatprep.subr.mxu0 0.0
    %511 = vmatpush1.msra.mxu0 0.0
    %512 = vmatprep.subr.mxu0 0.0
    %513 = vmatpush1.msra.mxu0 0.0
    %514 = vmatprep.subr.mxu0 0.0
    %515 = vmatpush1.msra.mxu0 0.0
    %516 = vmatprep.subr.mxu0 0.0
    %517 = vmatpush1.msra.mxu0 0.0
    %518 = vmatprep.subr.mxu0 0.0
    %519 = vmatpush1.msra.mxu0 0.0
    %520 = vmatprep.subr.mxu0 0.0
    %521 = vmatpush1.msra.mxu0 0.0
    %522 = vmatprep.subr.mxu0 0.0
    %523 = vmatpush1.msra.mxu0 0.0
    %524 = vmatprep.subr.mxu0 0.0
    %525 = vmatpush1.msra.mxu0 0.0
    %526 = vmatprep.subr.mxu0 0.0
    %527 = vmatpush1.msra.mxu0 0.0
    %528 = vmatprep.subr.mxu0 0.0
    %529 = vmatpush1.msra.mxu0 0.0
    %530 = vmatprep.subr.mxu0 0.0
    %531 = vmatpush1.msra.mxu0 0.0
    %532 = vmatprep.subr.mxu0 0.0
    %533 = vmatpush1.msra.mxu0 0.0
    %534 = vmatprep.subr.mxu0 0.0
    %535 = vmatpush1.msra.mxu0 0.0
    %536 = vmatprep.subr.mxu0 0.0
    %537 = vmatpush1.msra.mxu0 0.0
    %538 = vmatprep.subr.mxu0 0.0
    %539 = vmatpush1.msra.mxu0 0.0
    %540 = vmatprep.subr.mxu0 0.0
    %541 = vmatpush1.msra.mxu0 0.0
    %542 = vmatprep.subr.mxu0 0.0
    %543 = vmatpush1.msra.mxu0 0.0
    %544 = vmatprep.subr.mxu0 0.0
    %545 = vmatpush1.msra.mxu0 0.0
    %546 = vmatprep.subr.mxu0 0.0
    %547 = vmatpush1.msra.mxu0 0.0
    %548 = vmatprep.mubr.f32.mxu0 0.0
    %549 = vmatmul.mubr.f32.gmra.mrb[0].mxu0 %v482
    %v550 = vpop.f32.mrb[0].mxu0
    %v551 = vadd.f32 0.0, %v550
    %v552 = vpop.f32.mrb[0].mxu0
    %553 = vdwg.mxu0
    %v554 = vmul.f32 %v478, %v478
    %v555 = vsub.f32 %v551, %v554
    %v556 = vadd.f32 %v555, 1e-05
    %v557 = vrsqrt.pop %v556
    %v558 = vmul.f32 %v391, %v557
    %v559 = vmul.f32 %v478, %v558
    %v560 = vsub.f32 %v392, %v559
    %v561 = vlaneseq
    %v562 = vshrl.u32 %v561, 7
    %v563 = vsub.s32 0, %v562
    %v564 = vrot.slane %v558, %v563
    %v565 = vmul.f32 %v378, %v564
    %v566 = vlaneseq
    %v567 = vshrl.u32 %v566, 7
    %v568 = vsub.s32 0, %v567
    %v569 = vrot.slane %v560, %v568
    %v570 = vadd.f32 %v565, %v569
    %572 = vrot.lane.b32.xlu0 %v305, 64
    %v573 = vpop.permute.xlu0 %572
    %v575 = vadd.f32 %v570, %v573
    %v576 = vmax.f32 %v575, 0.0
    %v577 = vld [vmem:[%s3] sm:$0xf]
    %v578 = vld [vmem:[%s3 + $0x4] sm:$0xf]
    %v579 = vld [vmem:[%s3 + $0x8] sm:$0xf]
    %v580 = vld [vmem:[%s3 + $0xc] sm:$0xf]
    %v581 = vld [vmem:[%s3 + $0x10] sm:$0xf]
    %v582 = vld [vmem:[%s3 + $0x14] sm:$0xf]
    %v583 = vld [vmem:[%s3 + $0x18] sm:$0xf]
    %v584 = vld [vmem:[%s3 + $0x1c] sm:$0xf]
    %v585 = vpack.c.bf16 %v576, %v576
    %v594 = vunpack.c.l.b16 %v577
    %v595 = vunpack.c.l.b16 %v578
    %v596 = vunpack.c.l.b16 %v579
    %v597 = vunpack.c.l.b16 %v580
    %v598 = vunpack.c.l.b16 %v581
    %v599 = vunpack.c.l.b16 %v582
    %v600 = vunpack.c.l.b16 %v583
    %v601 = vunpack.c.l.b16 %v584
    %v602 = vpack.c.b16 %v595, %v594
    %v603 = vpack.c.b16 %v597, %v596
    %v604 = vpack.c.b16 %v599, %v598
    %v605 = vpack.c.b16 %v601, %v600
    %v611 = vsel %vm74, %v585, 0
    %613 = vmatprep.subr.bf16.mxu0 0
    %614 = vmatpush1.bf16.msra.mxu0 %v602
    %615 = vmatprep.subr.bf16.mxu0 0
    %616 = vmatpush1.bf16.msra.mxu0 %v603
    %617 = vmatprep.subr.bf16.mxu0 0
    %618 = vmatpush1.bf16.msra.mxu0 %v604
    %619 = vmatprep.subr.bf16.mxu0 0
    %620 = vmatpush1.bf16.msra.mxu0 %v605
    %621 = vmatprep.subr.bf16.mxu0 0
    %622 = vmatpush1.bf16.msra.mxu0 0
    %623 = vmatprep.subr.bf16.mxu0 0
    %624 = vmatpush1.bf16.msra.mxu0 0
    %625 = vmatprep.subr.bf16.mxu0 0
    %626 = vmatpush1.bf16.msra.mxu0 0
    %627 = vmatprep.subr.bf16.mxu0 0
    %628 = vmatpush1.bf16.msra.mxu0 0
    %629 = vmatprep.subr.bf16.mxu0 0
    %630 = vmatpush1.bf16.msra.mxu0 0
    %631 = vmatprep.subr.bf16.mxu0 0
    %632 = vmatpush1.bf16.msra.mxu0 0
    %633 = vmatprep.subr.bf16.mxu0 0
    %634 = vmatpush1.bf16.msra.mxu0 0
    %635 = vmatprep.subr.bf16.mxu0 0
    %636 = vmatpush1.bf16.msra.mxu0 0
    %637 = vmatprep.subr.bf16.mxu0 0
    %638 = vmatpush1.bf16.msra.mxu0 0
    %639 = vmatprep.subr.bf16.mxu0 0
    %640 = vmatpush1.bf16.msra.mxu0 0
    %641 = vmatprep.subr.bf16.mxu0 0
    %642 = vmatpush1.bf16.msra.mxu0 0
    %643 = vmatprep.subr.bf16.mxu0 0
    %644 = vmatpush1.bf16.msra.mxu0 0
    %645 = vmatprep.mubr.bf16.mxu0 0
    %646 = vmatmul.mubr.bf16.gmra.mrb[0].mxu0 %v611
    %v647 = vpop.f32.mrb[0].mxu0
    %v648 = vadd.f32 0.0, %v647
    %v649 = vpop.f32.mrb[0].mxu0
    %v650 = vpop.f32.mrb[0].mxu0
    %v651 = vpop.f32.mrb[0].mxu0
    %652 = vdwg.mxu0
    %v653 = vld [vmem:[%s7 + $0x4] sm:$0x1]
    %v654 = vld [vmem:[%s7 + $0x5] sm:$0x1]
    %v655 = vsel %vm74, %v648, 0.0
    %v656 = vrot.slane %v655, 4
    %v657 = vadd.f32 %v655, %v656
    %v658 = vrot.slane %v657, 2
    %v659 = vadd.f32 %v657, %v658
    %v660 = vrot.slane %v659, 1
    %v661 = vadd.f32 %v659, %v660
    %v662 = vmul.f32 %v648, %v648
    %v663 = vsel %vm74, %v662, 0.0
    %v664 = vrot.slane %v663, 4
    %v665 = vadd.f32 %v663, %v664
    %v666 = vrot.slane %v665, 2
    %v667 = vadd.f32 %v665, %v666
    %v668 = vrot.slane %v667, 1
    %v669 = vadd.f32 %v667, %v668
    %v671 = vsel %vm74, %v661, 0
    %673 = vmatprep.subr.mxu0 0.0
    %674 = vmatpush1.msra.mxu0 %v383
    %675 = vmatprep.subr.mxu0 0.0
    %676 = vmatpush1.msra.mxu0 %v384
    %677 = vmatprep.subr.mxu0 0.0
    %678 = vmatpush1.msra.mxu0 %v385
    %679 = vmatprep.subr.mxu0 0.0
    %680 = vmatpush1.msra.mxu0 %v386
    %681 = vmatprep.subr.mxu0 0.0
    %682 = vmatpush1.msra.mxu0 %v387
    %683 = vmatprep.subr.mxu0 0.0
    %684 = vmatpush1.msra.mxu0 %v388
    %685 = vmatprep.subr.mxu0 0.0
    %686 = vmatpush1.msra.mxu0 %v389
    %687 = vmatprep.subr.mxu0 0.0
    %688 = vmatpush1.msra.mxu0 %v390
    %689 = vmatprep.subr.mxu0 0.0
    %690 = vmatpush1.msra.mxu0 0.0
    %691 = vmatprep.subr.mxu0 0.0
    %692 = vmatpush1.msra.mxu0 0.0
    %693 = vmatprep.subr.mxu0 0.0
    %694 = vmatpush1.msra.mxu0 0.0
    %695 = vmatprep.subr.mxu0 0.0
    %696 = vmatpush1.msra.mxu0 0.0
    %697 = vmatprep.subr.mxu0 0.0
    %698 = vmatpush1.msra.mxu0 0.0
    %699 = vmatprep.subr.mxu0 0.0
    %700 = vmatpush1.msra.mxu0 0.0
    %701 = vmatprep.subr.mxu0 0.0
    %702 = vmatpush1.msra.mxu0 0.0
    %703 = vmatprep.subr.mxu0 0.0
    %704 = vmatpush1.msra.mxu0 0.0
    %705 = vmatprep.subr.mxu0 0.0
    %706 = vmatpush1.msra.mxu0 0.0
    %707 = vmatprep.subr.mxu0 0.0
    %708 = vmatpush1.msra.mxu0 0.0
    %709 = vmatprep.subr.mxu0 0.0
    %710 = vmatpush1.msra.mxu0 0.0
    %711 = vmatprep.subr.mxu0 0.0
    %712 = vmatpush1.msra.mxu0 0.0
    %713 = vmatprep.subr.mxu0 0.0
    %714 = vmatpush1.msra.mxu0 0.0
    %715 = vmatprep.subr.mxu0 0.0
    %716 = vmatpush1.msra.mxu0 0.0
    %717 = vmatprep.subr.mxu0 0.0
    %718 = vmatpush1.msra.mxu0 0.0
    %719 = vmatprep.subr.mxu0 0.0
    %720 = vmatpush1.msra.mxu0 0.0
    %721 = vmatprep.subr.mxu0 0.0
    %722 = vmatpush1.msra.mxu0 0.0
    %723 = vmatprep.subr.mxu0 0.0
    %724 = vmatpush1.msra.mxu0 0.0
    %725 = vmatprep.subr.mxu0 0.0
    %726 = vmatpush1.msra.mxu0 0.0
    %727 = vmatprep.subr.mxu0 0.0
    %728 = vmatpush1.msra.mxu0 0.0
    %729 = vmatprep.subr.mxu0 0.0
    %730 = vmatpush1.msra.mxu0 0.0
    %731 = vmatprep.subr.mxu0 0.0
    %732 = vmatpush1.msra.mxu0 0.0
    %733 = vmatprep.subr.mxu0 0.0
    %734 = vmatpush1.msra.mxu0 0.0
    %735 = vmatprep.subr.mxu0 0.0
    %736 = vmatpush1.msra.mxu0 0.0
    %737 = vmatprep.mubr.f32.mxu0 0.0
    %738 = vmatmul.mubr.f32.gmra.mrb[0].mxu0 %v671
    %v739 = vpop.f32.mrb[0].mxu0
    %v740 = vadd.f32 0.0, %v739
    %v741 = vpop.f32.mrb[0].mxu0
    %742 = vdwg.mxu0
    %v744 = vsel %vm74, %v669, 0
    %746 = vmatprep.subr.mxu0 0.0
    %747 = vmatpush1.msra.mxu0 %v383
    %748 = vmatprep.subr.mxu0 0.0
    %749 = vmatpush1.msra.mxu0 %v384
    %750 = vmatprep.subr.mxu0 0.0
    %751 = vmatpush1.msra.mxu0 %v385
    %752 = vmatprep.subr.mxu0 0.0
    %753 = vmatpush1.msra.mxu0 %v386
    %754 = vmatprep.subr.mxu0 0.0
    %755 = vmatpush1.msra.mxu0 %v387
    %756 = vmatprep.subr.mxu0 0.0
    %757 = vmatpush1.msra.mxu0 %v388
    %758 = vmatprep.subr.mxu0 0.0
    %759 = vmatpush1.msra.mxu0 %v389
    %760 = vmatprep.subr.mxu0 0.0
    %761 = vmatpush1.msra.mxu0 %v390
    %762 = vmatprep.subr.mxu0 0.0
    %763 = vmatpush1.msra.mxu0 0.0
    %764 = vmatprep.subr.mxu0 0.0
    %765 = vmatpush1.msra.mxu0 0.0
    %766 = vmatprep.subr.mxu0 0.0
    %767 = vmatpush1.msra.mxu0 0.0
    %768 = vmatprep.subr.mxu0 0.0
    %769 = vmatpush1.msra.mxu0 0.0
    %770 = vmatprep.subr.mxu0 0.0
    %771 = vmatpush1.msra.mxu0 0.0
    %772 = vmatprep.subr.mxu0 0.0
    %773 = vmatpush1.msra.mxu0 0.0
    %774 = vmatprep.subr.mxu0 0.0
    %775 = vmatpush1.msra.mxu0 0.0
    %776 = vmatprep.subr.mxu0 0.0
    %777 = vmatpush1.msra.mxu0 0.0
    %778 = vmatprep.subr.mxu0 0.0
    %779 = vmatpush1.msra.mxu0 0.0
    %780 = vmatprep.subr.mxu0 0.0
    %781 = vmatpush1.msra.mxu0 0.0
    %782 = vmatprep.subr.mxu0 0.0
    %783 = vmatpush1.msra.mxu0 0.0
    %784 = vmatprep.subr.mxu0 0.0
    %785 = vmatpush1.msra.mxu0 0.0
    %786 = vmatprep.subr.mxu0 0.0
    %787 = vmatpush1.msra.mxu0 0.0
    %788 = vmatprep.subr.mxu0 0.0
    %789 = vmatpush1.msra.mxu0 0.0
    %790 = vmatprep.subr.mxu0 0.0
    %791 = vmatpush1.msra.mxu0 0.0
    %792 = vmatprep.subr.mxu0 0.0
    %793 = vmatpush1.msra.mxu0 0.0
    %794 = vmatprep.subr.mxu0 0.0
    %795 = vmatpush1.msra.mxu0 0.0
    %796 = vmatprep.subr.mxu0 0.0
    %797 = vmatpush1.msra.mxu0 0.0
    %798 = vmatprep.subr.mxu0 0.0
    %799 = vmatpush1.msra.mxu0 0.0
    %800 = vmatprep.subr.mxu0 0.0
    %801 = vmatpush1.msra.mxu0 0.0
    %802 = vmatprep.subr.mxu0 0.0
    %803 = vmatpush1.msra.mxu0 0.0
    %804 = vmatprep.subr.mxu0 0.0
    %805 = vmatpush1.msra.mxu0 0.0
    %806 = vmatprep.subr.mxu0 0.0
    %807 = vmatpush1.msra.mxu0 0.0
    %808 = vmatprep.subr.mxu0 0.0
    %809 = vmatpush1.msra.mxu0 0.0
    %810 = vmatprep.mubr.f32.mxu0 0.0
    %811 = vmatmul.mubr.f32.gmra.mrb[0].mxu0 %v744
    %v812 = vpop.f32.mrb[0].mxu0
    %v813 = vadd.f32 0.0, %v812
    %v814 = vpop.f32.mrb[0].mxu0
    %815 = vdwg.mxu0
    %v816 = vmul.f32 %v740, %v740
    %v817 = vsub.f32 %v813, %v816
    %v818 = vadd.f32 %v817, 1e-05
    %v819 = vrsqrt.pop %v818
    %v820 = vmul.f32 %v653, %v819
    %v821 = vmul.f32 %v740, %v820
    %v822 = vsub.f32 %v654, %v821
    %v823 = vlaneseq
    %v824 = vshrl.u32 %v823, 7
    %v825 = vsub.s32 0, %v824
    %v826 = vrot.slane %v820, %v825
    %v827 = vmul.f32 %v648, %v826
    %v828 = vlaneseq
    %v829 = vshrl.u32 %v828, 7
    %v830 = vsub.s32 0, %v829
    %v831 = vrot.slane %v822, %v830
    %v832 = vadd.f32 %v827, %v831
    %v833 = vmax.f32 %v832, 0.0
    %v834 = vld [vmem:[%s4] sm:$0xf]
    %v835 = vld [vmem:[%s4 + $0x4] sm:$0xf]
    %v836 = vld [vmem:[%s4 + $0x8] sm:$0xf]
    %v837 = vld [vmem:[%s4 + $0xc] sm:$0xf]
    %v838 = vld [vmem:[%s4 + $0x10] sm:$0xf]
    %v839 = vld [vmem:[%s4 + $0x14] sm:$0xf]
    %v840 = vld [vmem:[%s4 + $0x18] sm:$0xf]
    %v841 = vld [vmem:[%s4 + $0x1c] sm:$0xf]
    %v842 = vpack.c.bf16 %v833, %v833
    %v851 = vunpack.c.l.b16 %v834
    %v852 = vunpack.c.l.b16 %v835
    %v853 = vunpack.c.l.b16 %v836
    %v854 = vunpack.c.l.b16 %v837
    %v855 = vunpack.c.l.b16 %v838
    %v856 = vunpack.c.l.b16 %v839
    %v857 = vunpack.c.l.b16 %v840
    %v858 = vunpack.c.l.b16 %v841
    %v859 = vpack.c.b16 %v852, %v851
    %v860 = vpack.c.b16 %v854, %v853
    %v861 = vpack.c.b16 %v856, %v855
    %v862 = vpack.c.b16 %v858, %v857
    %v868 = vsel %vm74, %v842, 0
    %870 = vmatprep.subr.bf16.mxu0 0
    %871 = vmatpush1.bf16.msra.mxu0 %v859
    %872 = vmatprep.subr.bf16.mxu0 0
    %873 = vmatpush1.bf16.msra.mxu0 %v860
    %874 = vmatprep.subr.bf16.mxu0 0
    %875 = vmatpush1.bf16.msra.mxu0 %v861
    %876 = vmatprep.subr.bf16.mxu0 0
    %877 = vmatpush1.bf16.msra.mxu0 %v862
    %878 = vmatprep.subr.bf16.mxu0 0
    %879 = vmatpush1.bf16.msra.mxu0 0
    %880 = vmatprep.subr.bf16.mxu0 0
    %881 = vmatpush1.bf16.msra.mxu0 0
    %882 = vmatprep.subr.bf16.mxu0 0
    %883 = vmatpush1.bf16.msra.mxu0 0
    %884 = vmatprep.subr.bf16.mxu0 0
    %885 = vmatpush1.bf16.msra.mxu0 0
    %886 = vmatprep.subr.bf16.mxu0 0
    %887 = vmatpush1.bf16.msra.mxu0 0
    %888 = vmatprep.subr.bf16.mxu0 0
    %889 = vmatpush1.bf16.msra.mxu0 0
    %890 = vmatprep.subr.bf16.mxu0 0
    %891 = vmatpush1.bf16.msra.mxu0 0
    %892 = vmatprep.subr.bf16.mxu0 0
    %893 = vmatpush1.bf16.msra.mxu0 0
    %894 = vmatprep.subr.bf16.mxu0 0
    %895 = vmatpush1.bf16.msra.mxu0 0
    %896 = vmatprep.subr.bf16.mxu0 0
    %897 = vmatpush1.bf16.msra.mxu0 0
    %898 = vmatprep.subr.bf16.mxu0 0
    %899 = vmatpush1.bf16.msra.mxu0 0
    %900 = vmatprep.subr.bf16.mxu0 0
    %901 = vmatpush1.bf16.msra.mxu0 0
    %902 = vmatprep.mubr.bf16.mxu0 0
    %903 = vmatmul.mubr.bf16.gmra.mrb[0].mxu0 %v868
    %v904 = vpop.f32.mrb[0].mxu0
    %v905 = vadd.f32 0.0, %v904
    %v906 = vpop.f32.mrb[0].mxu0
    %v907 = vpop.f32.mrb[0].mxu0
    %v908 = vpop.f32.mrb[0].mxu0
    %909 = vdwg.mxu0
    %v910 = vld [vmem:[%s7 + $0x6] sm:$0x1]
    %v911 = vld [vmem:[%s7 + $0x7] sm:$0x1]
    %v912 = vsel %vm74, %v905, 0.0
    %v913 = vrot.slane %v912, 4
    %v914 = vadd.f32 %v912, %v913
    %v915 = vrot.slane %v914, 2
    %v916 = vadd.f32 %v914, %v915
    %v917 = vrot.slane %v916, 1
    %v918 = vadd.f32 %v916, %v917
    %v919 = vmul.f32 %v905, %v905
    %v920 = vsel %vm74, %v919, 0.0
    %v921 = vrot.slane %v920, 4
    %v922 = vadd.f32 %v920, %v921
    %v923 = vrot.slane %v922, 2
    %v924 = vadd.f32 %v922, %v923
    %v925 = vrot.slane %v924, 1
    %v926 = vadd.f32 %v924, %v925
    %v928 = vsel %vm74, %v918, 0
    %930 = vmatprep.subr.mxu0 0.0
    %931 = vmatpush1.msra.mxu0 %v383
    %932 = vmatprep.subr.mxu0 0.0
    %933 = vmatpush1.msra.mxu0 %v384
    %934 = vmatprep.subr.mxu0 0.0
    %935 = vmatpush1.msra.mxu0 %v385
    %936 = vmatprep.subr.mxu0 0.0
    %937 = vmatpush1.msra.mxu0 %v386
    %938 = vmatprep.subr.mxu0 0.0
    %939 = vmatpush1.msra.mxu0 %v387
    %940 = vmatprep.subr.mxu0 0.0
    %941 = vmatpush1.msra.mxu0 %v388
    %942 = vmatprep.subr.mxu0 0.0
    %943 = vmatpush1.msra.mxu0 %v389
    %944 = vmatprep.subr.mxu0 0.0
    %945 = vmatpush1.msra.mxu0 %v390
    %946 = vmatprep.subr.mxu0 0.0
    %947 = vmatpush1.msra.mxu0 0.0
    %948 = vmatprep.subr.mxu0 0.0
    %949 = vmatpush1.msra.mxu0 0.0
    %950 = vmatprep.subr.mxu0 0.0
    %951 = vmatpush1.msra.mxu0 0.0
    %952 = vmatprep.subr.mxu0 0.0
    %953 = vmatpush1.msra.mxu0 0.0
    %954 = vmatprep.subr.mxu0 0.0
    %955 = vmatpush1.msra.mxu0 0.0
    %956 = vmatprep.subr.mxu0 0.0
    %957 = vmatpush1.msra.mxu0 0.0
    %958 = vmatprep.subr.mxu0 0.0
    %959 = vmatpush1.msra.mxu0 0.0
    %960 = vmatprep.subr.mxu0 0.0
    %961 = vmatpush1.msra.mxu0 0.0
    %962 = vmatprep.subr.mxu0 0.0
    %963 = vmatpush1.msra.mxu0 0.0
    %964 = vmatprep.subr.mxu0 0.0
    %965 = vmatpush1.msra.mxu0 0.0
    %966 = vmatprep.subr.mxu0 0.0
    %967 = vmatpush1.msra.mxu0 0.0
    %968 = vmatprep.subr.mxu0 0.0
    %969 = vmatpush1.msra.mxu0 0.0
    %970 = vmatprep.subr.mxu0 0.0
    %971 = vmatpush1.msra.mxu0 0.0
    %972 = vmatprep.subr.mxu0 0.0
    %973 = vmatpush1.msra.mxu0 0.0
    %974 = vmatprep.subr.mxu0 0.0
    %975 = vmatpush1.msra.mxu0 0.0
    %976 = vmatprep.subr.mxu0 0.0
    %977 = vmatpush1.msra.mxu0 0.0
    %978 = vmatprep.subr.mxu0 0.0
    %979 = vmatpush1.msra.mxu0 0.0
    %980 = vmatprep.subr.mxu0 0.0
    %981 = vmatpush1.msra.mxu0 0.0
    %982 = vmatprep.subr.mxu0 0.0
    %983 = vmatpush1.msra.mxu0 0.0
    %984 = vmatprep.subr.mxu0 0.0
    %985 = vmatpush1.msra.mxu0 0.0
    %986 = vmatprep.subr.mxu0 0.0
    %987 = vmatpush1.msra.mxu0 0.0
    %988 = vmatprep.subr.mxu0 0.0
    %989 = vmatpush1.msra.mxu0 0.0
    %990 = vmatprep.subr.mxu0 0.0
    %991 = vmatpush1.msra.mxu0 0.0
    %992 = vmatprep.subr.mxu0 0.0
    %993 = vmatpush1.msra.mxu0 0.0
    %994 = vmatprep.mubr.f32.mxu0 0.0
    %995 = vmatmul.mubr.f32.gmra.mrb[0].mxu0 %v928
    %v996 = vpop.f32.mrb[0].mxu0
    %v997 = vadd.f32 0.0, %v996
    %v998 = vpop.f32.mrb[0].mxu0
    %999 = vdwg.mxu0
    %v1001 = vsel %vm74, %v926, 0
    %1003 = vmatprep.subr.mxu0 0.0
    %1004 = vmatpush1.msra.mxu0 %v383
    %1005 = vmatprep.subr.mxu0 0.0
    %1006 = vmatpush1.msra.mxu0 %v384
    %1007 = vmatprep.subr.mxu0 0.0
    %1008 = vmatpush1.msra.mxu0 %v385
    %1009 = vmatprep.subr.mxu0 0.0
    %1010 = vmatpush1.msra.mxu0 %v386
    %1011 = vmatprep.subr.mxu0 0.0
    %1012 = vmatpush1.msra.mxu0 %v387
    %1013 = vmatprep.subr.mxu0 0.0
    %1014 = vmatpush1.msra.mxu0 %v388
    %1015 = vmatprep.subr.mxu0 0.0
    %1016 = vmatpush1.msra.mxu0 %v389
    %1017 = vmatprep.subr.mxu0 0.0
    %1018 = vmatpush1.msra.mxu0 %v390
    %1019 = vmatprep.subr.mxu0 0.0
    %1020 = vmatpush1.msra.mxu0 0.0
    %1021 = vmatprep.subr.mxu0 0.0
    %1022 = vmatpush1.msra.mxu0 0.0
    %1023 = vmatprep.subr.mxu0 0.0
    %1024 = vmatpush1.msra.mxu0 0.0
    %1025 = vmatprep.subr.mxu0 0.0
    %1026 = vmatpush1.msra.mxu0 0.0
    %1027 = vmatprep.subr.mxu0 0.0
    %1028 = vmatpush1.msra.mxu0 0.0
    %1029 = vmatprep.subr.mxu0 0.0
    %1030 = vmatpush1.msra.mxu0 0.0
    %1031 = vmatprep.subr.mxu0 0.0
    %1032 = vmatpush1.msra.mxu0 0.0
    %1033 = vmatprep.subr.mxu0 0.0
    %1034 = vmatpush1.msra.mxu0 0.0
    %1035 = vmatprep.subr.mxu0 0.0
    %1036 = vmatpush1.msra.mxu0 0.0
    %1037 = vmatprep.subr.mxu0 0.0
    %1038 = vmatpush1.msra.mxu0 0.0
    %1039 = vmatprep.subr.mxu0 0.0
    %1040 = vmatpush1.msra.mxu0 0.0
    %1041 = vmatprep.subr.mxu0 0.0
    %1042 = vmatpush1.msra.mxu0 0.0
    %1043 = vmatprep.subr.mxu0 0.0
    %1044 = vmatpush1.msra.mxu0 0.0
    %1045 = vmatprep.subr.mxu0 0.0
    %1046 = vmatpush1.msra.mxu0 0.0
    %1047 = vmatprep.subr.mxu0 0.0
    %1048 = vmatpush1.msra.mxu0 0.0
    %1049 = vmatprep.subr.mxu0 0.0
    %1050 = vmatpush1.msra.mxu0 0.0
    %1051 = vmatprep.subr.mxu0 0.0
    %1052 = vmatpush1.msra.mxu0 0.0
    %1053 = vmatprep.subr.mxu0 0.0
    %1054 = vmatpush1.msra.mxu0 0.0
    %1055 = vmatprep.subr.mxu0 0.0
    %1056 = vmatpush1.msra.mxu0 0.0
    %1057 = vmatprep.subr.mxu0 0.0
    %1058 = vmatpush1.msra.mxu0 0.0
    %1059 = vmatprep.subr.mxu0 0.0
    %1060 = vmatpush1.msra.mxu0 0.0
    %1061 = vmatprep.subr.mxu0 0.0
    %1062 = vmatpush1.msra.mxu0 0.0
    %1063 = vmatprep.subr.mxu0 0.0
    %1064 = vmatpush1.msra.mxu0 0.0
    %1065 = vmatprep.subr.mxu0 0.0
    %1066 = vmatpush1.msra.mxu0 0.0
    %1067 = vmatprep.mubr.f32.mxu0 0.0
    %1068 = vmatmul.mubr.f32.gmra.mrb[0].mxu0 %v1001
    %v1069 = vpop.f32.mrb[0].mxu0
    %v1070 = vadd.f32 0.0, %v1069
    %v1071 = vpop.f32.mrb[0].mxu0
    %1072 = vdwg.mxu0
    %v1073 = vmul.f32 %v997, %v997
    %v1074 = vsub.f32 %v1070, %v1073
    %v1075 = vadd.f32 %v1074, 1e-05
    %v1076 = vrsqrt.pop %v1075
    %v1077 = vmul.f32 %v910, %v1076
    %v1078 = vmul.f32 %v997, %v1077
    %v1079 = vsub.f32 %v911, %v1078
    %v1080 = vlaneseq
    %v1081 = vshrl.u32 %v1080, 7
    %v1082 = vsub.s32 0, %v1081
    %v1083 = vrot.slane %v1077, %v1082
    %v1084 = vmul.f32 %v905, %v1083
    %v1085 = vlaneseq
    %v1086 = vshrl.u32 %v1085, 7
    %v1087 = vsub.s32 0, %v1086
    %v1088 = vrot.slane %v1079, %v1087
    %v1089 = vadd.f32 %v1084, %v1088
    %v1090 = vadd.f32 %v1089, %v576
    %v1091 = vmax.f32 %v1090, 0.0
    %v1092 = vpack.c.bf16 %v1091, %v1091
    %v1093 = vld [vmem:[%s8] sm:$0xff]
    %v1094 = vld [vmem:[%s8 + $0x8] sm:$0xff]
    %v1095 = vld [vmem:[%s8 + $0x10] sm:$0xff]
    %v1096 = vld [vmem:[%s8 + $0x18] sm:$0xff]
    %v1097 = vld [vmem:[%s8 + $0x20] sm:$0xff]
    %v1098 = vld [vmem:[%s8 + $0x28] sm:$0xff]
    %v1099 = vld [vmem:[%s8 + $0x30] sm:$0xff]
    %v1100 = vld [vmem:[%s8 + $0x38] sm:$0xff]
    %v1101 = vld [vmem:[%s8 + $0x40] sm:$0xff]
    %v1102 = vld [vmem:[%s8 + $0x48] sm:$0xff]
    %v1103 = vld [vmem:[%s8 + $0x50] sm:$0xff]
    %v1104 = vld [vmem:[%s8 + $0x58] sm:$0xff]
    %v1105 = vld [vmem:[%s8 + $0x60] sm:$0xff]
    %v1106 = vld [vmem:[%s8 + $0x68] sm:$0xff]
    %v1107 = vld [vmem:[%s8 + $0x70] sm:$0xff]
    %v1108 = vld [vmem:[%s8 + $0x78] sm:$0xff]
    %v1109 = vld [vmem:[%s8 + $0x80] sm:$0xff]
    %v1110 = vld [vmem:[%s8 + $0x88] sm:$0xff]
    %v1111 = vld [vmem:[%s8 + $0x90] sm:$0xff]
    %v1112 = vld [vmem:[%s8 + $0x98] sm:$0xff]
    %v1113 = vld [vmem:[%s8 + $0xa0] sm:$0xff]
    %v1114 = vld [vmem:[%s8 + $0xa8] sm:$0xff]
    %v1115 = vld [vmem:[%s8 + $0xb0] sm:$0xff]
    %v1116 = vld [vmem:[%s8 + $0xb8] sm:$0xff]
    %v1117 = vld [vmem:[%s8 + $0xc0] sm:$0xff]
    %v1118 = vld [vmem:[%s8 + $0xc8] sm:$0xff]
    %v1119 = vld [vmem:[%s8 + $0xd0] sm:$0xff]
    %v1120 = vld [vmem:[%s8 + $0xd8] sm:$0xff]
    %v1121 = vld [vmem:[%s8 + $0xe0] sm:$0xff]
    %v1122 = vld [vmem:[%s8 + $0xe8] sm:$0xff]
    %v1123 = vld [vmem:[%s8 + $0xf0] sm:$0xff]
    %v1124 = vld [vmem:[%s8 + $0xf8] sm:$0xff]
    %v1125 = vld [vmem:[%s9] ss:$2 sm:$0xff]
    %v1127 = vlaneseq
    %v1128 = vshrl.u32 %v1127, 7
    %v1129 = vsub.s32 0, %v1128
    %v1130 = vrot.slane %v1125, %v1129
    %v1131 = vlaneseq
    %v1132 = vshrl.u32 %v1131, 7
    %v1133 = vsub.s32 1, %v1132
    %v1134 = vrot.slane %v1125, %v1133
    %v1135 = vlaneseq
    %v1136 = vshrl.u32 %v1135, 7
    %v1137 = vsub.s32 2, %v1136
    %v1138 = vrot.slane %v1125, %v1137
    %v1139 = vlaneseq
    %v1140 = vshrl.u32 %v1139, 7
    %v1141 = vsub.s32 3, %v1140
    %v1142 = vrot.slane %v1125, %v1141
    %v1143 = vlaneseq
    %v1144 = vshrl.u32 %v1143, 7
    %v1145 = vsub.s32 4, %v1144
    %v1146 = vrot.slane %v1125, %v1145
    %v1147 = vlaneseq
    %v1148 = vshrl.u32 %v1147, 7
    %v1149 = vsub.s32 5, %v1148
    %v1150 = vrot.slane %v1125, %v1149
    %v1151 = vlaneseq
    %v1152 = vshrl.u32 %v1151, 7
    %v1153 = vsub.s32 6, %v1152
    %v1154 = vrot.slane %v1125, %v1153
    %v1155 = vlaneseq
    %v1156 = vshrl.u32 %v1155, 7
    %v1157 = vsub.s32 7, %v1156
    %v1158 = vrot.slane %v1125, %v1157
    %v1199 = vunpack.c.l.b16 %v1093
    %v1200 = vunpack.c.h.b16 %v1093
    %v1201 = vunpack.c.l.b16 %v1094
    %v1202 = vunpack.c.h.b16 %v1094
    %v1203 = vunpack.c.l.b16 %v1095
    %v1204 = vunpack.c.h.b16 %v1095
    %v1205 = vunpack.c.l.b16 %v1096
    %v1206 = vunpack.c.h.b16 %v1096
    %v1207 = vunpack.c.l.b16 %v1097
    %v1208 = vunpack.c.h.b16 %v1097
    %v1209 = vunpack.c.l.b16 %v1098
    %v1210 = vunpack.c.h.b16 %v1098
    %v1211 = vunpack.c.l.b16 %v1099
    %v1212 = vunpack.c.h.b16 %v1099
    %v1213 = vunpack.c.l.b16 %v1100
    %v1214 = vunpack.c.h.b16 %v1100
    %v1215 = vunpack.c.l.b16 %v1101
    %v1216 = vunpack.c.h.b16 %v1101
    %v1217 = vunpack.c.l.b16 %v1102
    %v1218 = vunpack.c.h.b16 %v1102
    %v1219 = vunpack.c.l.b16 %v1103
    %v1220 = vunpack.c.h.b16 %v1103
    %v1221 = vunpack.c.l.b16 %v1104
    %v1222 = vunpack.c.h.b16 %v1104
    %v1223 = vunpack.c.l.b16 %v1105
    %v1224 = vunpack.c.h.b16 %v1105
    %v1225 = vunpack.c.l.b16 %v1106
    %v1226 = vunpack.c.h.b16 %v1106
    %v1227 = vunpack.c.l.b16 %v1107
    %v1228 = vunpack.c.h.b16 %v1107
    %v1229 = vunpack.c.l.b16 %v1108
    %v1230 = vunpack.c.h.b16 %v1108
    %v1231 = vunpack.c.l.b16 %v1109
    %v1232 = vunpack.c.h.b16 %v1109
    %v1233 = vunpack.c.l.b16 %v1110
    %v1234 = vunpack.c.h.b16 %v1110
    %v1235 = vunpack.c.l.b16 %v1111
    %v1236 = vunpack.c.h.b16 %v1111
    %v1237 = vunpack.c.l.b16 %v1112
    %v1238 = vunpack.c.h.b16 %v1112
    %v1239 = vunpack.c.l.b16 %v1113
    %v1240 = vunpack.c.h.b16 %v1113
    %v1241 = vunpack.c.l.b16 %v1114
    %v1242 = vunpack.c.h.b16 %v1114
    %v1243 = vunpack.c.l.b16 %v1115
    %v1244 = vunpack.c.h.b16 %v1115
    %v1245 = vunpack.c.l.b16 %v1116
    %v1246 = vunpack.c.h.b16 %v1116
    %v1247 = vunpack.c.l.b16 %v1117
    %v1248 = vunpack.c.h.b16 %v1117
    %v1249 = vunpack.c.l.b16 %v1118
    %v1250 = vunpack.c.h.b16 %v1118
    %v1251 = vunpack.c.l.b16 %v1119
    %v1252 = vunpack.c.h.b16 %v1119
    %v1253 = vunpack.c.l.b16 %v1120
    %v1254 = vunpack.c.h.b16 %v1120
    %v1255 = vunpack.c.l.b16 %v1121
    %v1256 = vunpack.c.h.b16 %v1121
    %v1257 = vunpack.c.l.b16 %v1122
    %v1258 = vunpack.c.h.b16 %v1122
    %v1259 = vunpack.c.l.b16 %v1123
    %v1260 = vunpack.c.h.b16 %v1123
    %v1261 = vunpack.c.l.b16 %v1124
    %v1262 = vunpack.c.h.b16 %v1124
    %v1263 = vpack.c.b16 %v1207, %v1199
    %v1264 = vpack.c.b16 %v1208, %v1200
    %v1265 = vpack.c.b16 %v1209, %v1201
    %v1266 = vpack.c.b16 %v1210, %v1202
    %v1267 = vpack.c.b16 %v1211, %v1203
    %v1268 = vpack.c.b16 %v1212, %v1204
    %v1269 = vpack.c.b16 %v1213, %v1205
    %v1270 = vpack.c.b16 %v1214, %v1206
    %v1271 = vpack.c.b16 %v1223, %v1215
    %v1272 = vpack.c.b16 %v1224, %v1216
    %v1273 = vpack.c.b16 %v1225, %v1217
    %v1274 = vpack.c.b16 %v1226, %v1218
    %v1275 = vpack.c.b16 %v1227, %v1219
    %v1276 = vpack.c.b16 %v1228, %v1220
    %v1277 = vpack.c.b16 %v1229, %v1221
    %v1278 = vpack.c.b16 %v1230, %v1222
    %v1279 = vpack.c.b16 %v1239, %v1231
    %v1280 = vpack.c.b16 %v1240, %v1232
    %v1281 = vpack.c.b16 %v1241, %v1233
    %v1282 = vpack.c.b16 %v1242, %v1234
    %v1283 = vpack.c.b16 %v1243, %v1235
    %v1284 = vpack.c.b16 %v1244, %v1236
    %v1285 = vpack.c.b16 %v1245, %v1237
    %v1286 = vpack.c.b16 %v1246, %v1238
    %v1287 = vpack.c.b16 %v1255, %v1247
    %v1288 = vpack.c.b16 %v1256, %v1248
    %v1289 = vpack.c.b16 %v1257, %v1249
    %v1290 = vpack.c.b16 %v1258, %v1250
    %v1291 = vpack.c.b16 %v1259, %v1251
    %v1292 = vpack.c.b16 %v1260, %v1252
    %v1293 = vpack.c.b16 %v1261, %v1253
    %v1294 = vpack.c.b16 %v1262, %v1254
    %v1328 = vsel %vm74, %v1092, 0
    %1330 = vmatprep.subr.bf16.mxu0 %v1264
    %1331 = vmatpush1.bf16.msra.mxu0 %v1263
    %1332 = vmatprep.subr.bf16.mxu0 %v1272
    %1333 = vmatpush1.bf16.msra.mxu0 %v1271
    %1334 = vmatprep.subr.bf16.mxu0 %v1280
    %1335 = vmatpush1.bf16.msra.mxu0 %v1279
    %1336 = vmatprep.subr.bf16.mxu0 %v1288
    %1337 = vmatpush1.bf16.msra.mxu0 %v1287
    %1338 = vmatprep.subr.bf16.mxu0 0
    %1339 = vmatpush1.bf16.msra.mxu0 0
    %1340 = vmatprep.subr.bf16.mxu0 0
    %1341 = vmatpush1.bf16.msra.mxu0 0
    %1342 = vmatprep.subr.bf16.mxu0 0
    %1343 = vmatpush1.bf16.msra.mxu0 0
    %1344 = vmatprep.subr.bf16.mxu0 0
    %1345 = vmatpush1.bf16.msra.mxu0 0
    %1346 = vmatprep.subr.bf16.mxu0 0
    %1347 = vmatpush1.bf16.msra.mxu0 0
    %1348 = vmatprep.subr.bf16.mxu0 0
    %1349 = vmatpush1.bf16.msra.mxu0 0
    %1350 = vmatprep.subr.bf16.mxu0 0
    %1351 = vmatpush1.bf16.msra.mxu0 0
    %1352 = vmatprep.subr.bf16.mxu0 0
    %1353 = vmatpush1.bf16.msra.mxu0 0
    %1354 = vmatprep.subr.bf16.mxu0 0
    %1355 = vmatpush1.bf16.msra.mxu0 0
    %1356 = vmatprep.subr.bf16.mxu0 0
    %1357 = vmatpush1.bf16.msra.mxu0 0
    %1358 = vmatprep.subr.bf16.mxu0 0
    %1359 = vmatpush1.bf16.msra.mxu0 0
    %1360 = vmatprep.subr.bf16.mxu0 0
    %1361 = vmatpush1.bf16.msra.mxu0 0
    %1362 = vmatprep.mubr.bf16.mxu0 0
    %1363 = vmatmul.mubr.bf16.gmra.mrb[0].mxu0 %v1328
    %v1364 = vpop.f32.mrb[0].mxu0
    %v1365 = vadd.f32 %v1130, %v1364
    %v1366 = vpop.f32.mrb[0].mxu0
    %v1367 = vadd.f32 %v1134, %v1366
    %v1368 = vpop.f32.mrb[0].mxu0
    %v1369 = vpop.f32.mrb[0].mxu0
    %1370 = vdwg.mxu0
    %1371 = vmatprep.subr.bf16.mxu0 %v1266
    %1372 = vmatpush1.bf16.msra.mxu0 %v1265
    %1373 = vmatprep.subr.bf16.mxu0 %v1274
    %1374 = vmatpush1.bf16.msra.mxu0 %v1273
    %1375 = vmatprep.subr.bf16.mxu0 %v1282
    %1376 = vmatpush1.bf16.msra.mxu0 %v1281
    %1377 = vmatprep.subr.bf16.mxu0 %v1290
    %1378 = vmatpush1.bf16.msra.mxu0 %v1289
    %1379 = vmatprep.subr.bf16.mxu0 0
    %1380 = vmatpush1.bf16.msra.mxu0 0
    %1381 = vmatprep.subr.bf16.mxu0 0
    %1382 = vmatpush1.bf16.msra.mxu0 0
    %1383 = vmatprep.subr.bf16.mxu0 0
    %1384 = vmatpush1.bf16.msra.mxu0 0
    %1385 = vmatprep.subr.bf16.mxu0 0
    %1386 = vmatpush1.bf16.msra.mxu0 0
    %1387 = vmatprep.subr.bf16.mxu0 0
    %1388 = vmatpush1.bf16.msra.mxu0 0
    %1389 = vmatprep.subr.bf16.mxu0 0
    %1390 = vmatpush1.bf16.msra.mxu0 0
    %1391 = vmatprep.subr.bf16.mxu0 0
    %1392 = vmatpush1.bf16.msra.mxu0 0
    %1393 = vmatprep.subr.bf16.mxu0 0
    %1394 = vmatpush1.bf16.msra.mxu0 0
    %1395 = vmatprep.subr.bf16.mxu0 0
    %1396 = vmatpush1.bf16.msra.mxu0 0
    %1397 = vmatprep.subr.bf16.mxu0 0
    %1398 = vmatpush1.bf16.msra.mxu0 0
    %1399 = vmatprep.subr.bf16.mxu0 0
    %1400 = vmatpush1.bf16.msra.mxu0 0
    %1401 = vmatprep.subr.bf16.mxu0 0
    %1402 = vmatpush1.bf16.msra.mxu0 0
    %1403 = vmatprep.mubr.bf16.mxu0 0
    %1404 = vmatmul.mubr.bf16.gmra.mrb[0].mxu0 %v1328
    %v1405 = vpop.f32.mrb[0].mxu0
    %v1406 = vadd.f32 %v1138, %v1405
    %v1407 = vpop.f32.mrb[0].mxu0
    %v1408 = vadd.f32 %v1142, %v1407
    %v1409 = vpop.f32.mrb[0].mxu0
    %v1410 = vpop.f32.mrb[0].mxu0
    %1411 = vdwg.mxu0
    %1412 = vmatprep.subr.bf16.mxu0 %v1268
    %1413 = vmatpush1.bf16.msra.mxu0 %v1267
    %1414 = vmatprep.subr.bf16.mxu0 %v1276
    %1415 = vmatpush1.bf16.msra.mxu0 %v1275
    %1416 = vmatprep.subr.bf16.mxu0 %v1284
    %1417 = vmatpush1.bf16.msra.mxu0 %v1283
    %1418 = vmatprep.subr.bf16.mxu0 %v1292
    %1419 = vmatpush1.bf16.msra.mxu0 %v1291
    %1420 = vmatprep.subr.bf16.mxu0 0
    %1421 = vmatpush1.bf16.msra.mxu0 0
    %1422 = vmatprep.subr.bf16.mxu0 0
    %1423 = vmatpush1.bf16.msra.mxu0 0
    %1424 = vmatprep.subr.bf16.mxu0 0
    %1425 = vmatpush1.bf16.msra.mxu0 0
    %1426 = vmatprep.subr.bf16.mxu0 0
    %1427 = vmatpush1.bf16.msra.mxu0 0
    %1428 = vmatprep.subr.bf16.mxu0 0
    %1429 = vmatpush1.bf16.msra.mxu0 0
    %1430 = vmatprep.subr.bf16.mxu0 0
    %1431 = vmatpush1.bf16.msra.mxu0 0
    %1432 = vmatprep.subr.bf16.mxu0 0
    %1433 = vmatpush1.bf16.msra.mxu0 0
    %1434 = vmatprep.subr.bf16.mxu0 0
    %1435 = vmatpush1.bf16.msra.mxu0 0
    %1436 = vmatprep.subr.bf16.mxu0 0
    %1437 = vmatpush1.bf16.msra.mxu0 0
    %1438 = vmatprep.subr.bf16.mxu0 0
    %1439 = vmatpush1.bf16.msra.mxu0 0
    %1440 = vmatprep.subr.bf16.mxu0 0
    %1441 = vmatpush1.bf16.msra.mxu0 0
    %1442 = vmatprep.subr.bf16.mxu0 0
    %1443 = vmatpush1.bf16.msra.mxu0 0
    %1444 = vmatprep.mubr.bf16.mxu0 0
    %1445 = vmatmul.mubr.bf16.gmra.mrb[0].mxu0 %v1328
    %v1446 = vpop.f32.mrb[0].mxu0
    %v1447 = vadd.f32 %v1146, %v1446
    %v1448 = vpop.f32.mrb[0].mxu0
    %v1449 = vadd.f32 %v1150, %v1448
    %v1450 = vpop.f32.mrb[0].mxu0
    %v1451 = vpop.f32.mrb[0].mxu0
    %1452 = vdwg.mxu0
    %1453 = vmatprep.subr.bf16.mxu0 %v1270
    %1454 = vmatpush1.bf16.msra.mxu0 %v1269
    %1455 = vmatprep.subr.bf16.mxu0 %v1278
    %1456 = vmatpush1.bf16.msra.mxu0 %v1277
    %1457 = vmatprep.subr.bf16.mxu0 %v1286
    %1458 = vmatpush1.bf16.msra.mxu0 %v1285
    %1459 = vmatprep.subr.bf16.mxu0 %v1294
    %1460 = vmatpush1.bf16.msra.mxu0 %v1293
    %1461 = vmatprep.subr.bf16.mxu0 0
    %1462 = vmatpush1.bf16.msra.mxu0 0
    %1463 = vmatprep.subr.bf16.mxu0 0
    %1464 = vmatpush1.bf16.msra.mxu0 0
    %1465 = vmatprep.subr.bf16.mxu0 0
    %1466 = vmatpush1.bf16.msra.mxu0 0
    %1467 = vmatprep.subr.bf16.mxu0 0
    %1468 = vmatpush1.bf16.msra.mxu0 0
    %1469 = vmatprep.subr.bf16.mxu0 0
    %1470 = vmatpush1.bf16.msra.mxu0 0
    %1471 = vmatprep.subr.bf16.mxu0 0
    %1472 = vmatpush1.bf16.msra.mxu0 0
    %1473 = vmatprep.subr.bf16.mxu0 0
    %1474 = vmatpush1.bf16.msra.mxu0 0
    %1475 = vmatprep.subr.bf16.mxu0 0
    %1476 = vmatpush1.bf16.msra.mxu0 0
    %1477 = vmatprep.subr.bf16.mxu0 0
    %1478 = vmatpush1.bf16.msra.mxu0 0
    %1479 = vmatprep.subr.bf16.mxu0 0
    %1480 = vmatpush1.bf16.msra.mxu0 0
    %1481 = vmatprep.subr.bf16.mxu0 0
    %1482 = vmatpush1.bf16.msra.mxu0 0
    %1483 = vmatprep.subr.bf16.mxu0 0
    %1484 = vmatpush1.bf16.msra.mxu0 0
    %1485 = vmatprep.mubr.bf16.mxu0 0
    %1486 = vmatmul.mubr.bf16.gmra.mrb[0].mxu0 %v1328
    %v1487 = vpop.f32.mrb[0].mxu0
    %v1488 = vadd.f32 %v1154, %v1487
    %v1489 = vpop.f32.mrb[0].mxu0
    %v1490 = vadd.f32 %v1158, %v1489
    %v1491 = vpop.f32.mrb[0].mxu0
    %v1492 = vpop.f32.mrb[0].mxu0
    %1493 = vdwg.mxu0
    %v1494 = vmax.f32 %v1365, 0.0
    %v1495 = vmax.f32 %v1367, 0.0
    %v1496 = vmax.f32 %v1406, 0.0
    %v1497 = vmax.f32 %v1408, 0.0
    %v1498 = vmax.f32 %v1447, 0.0
    %v1499 = vmax.f32 %v1449, 0.0
    %v1500 = vmax.f32 %v1488, 0.0
    %v1501 = vmax.f32 %v1490, 0.0
    %v1502 = vld [vmem:[%s10] sm:$0xff]
    %v1503 = vld [vmem:[%s10 + $0x8] sm:$0xff]
    %v1504 = vld [vmem:[%s10 + $0x10] sm:$0xff]
    %v1505 = vld [vmem:[%s10 + $0x18] sm:$0xff]
    %v1506 = vld [vmem:[%s10 + $0x20] sm:$0xff]
    %v1507 = vld [vmem:[%s10 + $0x28] sm:$0xff]
    %v1508 = vld [vmem:[%s10 + $0x30] sm:$0xff]
    %v1509 = vld [vmem:[%s10 + $0x38] sm:$0xff]
    %v1510 = vld [vmem:[%s10 + $0x40] sm:$0xff]
    %v1511 = vld [vmem:[%s10 + $0x48] sm:$0xff]
    %v1512 = vld [vmem:[%s10 + $0x50] sm:$0xff]
    %v1513 = vld [vmem:[%s10 + $0x58] sm:$0xff]
    %v1514 = vld [vmem:[%s10 + $0x60] sm:$0xff]
    %v1515 = vld [vmem:[%s10 + $0x68] sm:$0xff]
    %v1516 = vld [vmem:[%s10 + $0x70] sm:$0xff]
    %v1517 = vld [vmem:[%s10 + $0x78] sm:$0xff]
    %v1518 = vld [vmem:[%s10 + $0x80] sm:$0xff]
    %v1519 = vld [vmem:[%s10 + $0x88] sm:$0xff]
    %v1520 = vld [vmem:[%s10 + $0x90] sm:$0xff]
    %v1521 = vld [vmem:[%s10 + $0x98] sm:$0xff]
    %v1522 = vld [vmem:[%s10 + $0xa0] sm:$0xff]
    %v1523 = vld [vmem:[%s10 + $0xa8] sm:$0xff]
    %v1524 = vld [vmem:[%s10 + $0xb0] sm:$0xff]
    %v1525 = vld [vmem:[%s10 + $0xb8] sm:$0xff]
    %v1526 = vld [vmem:[%s10 + $0xc0] sm:$0xff]
    %v1527 = vld [vmem:[%s10 + $0xc8] sm:$0xff]
    %v1528 = vld [vmem:[%s10 + $0xd0] sm:$0xff]
    %v1529 = vld [vmem:[%s10 + $0xd8] sm:$0xff]
    %v1530 = vld [vmem:[%s10 + $0xe0] sm:$0xff]
    %v1531 = vld [vmem:[%s10 + $0xe8] sm:$0xff]
    %v1532 = vld [vmem:[%s10 + $0xf0] sm:$0xff]
    %v1533 = vld [vmem:[%s10 + $0xf8] sm:$0xff]
    %v1534 = vld [vmem:[%s10 + $0x100] sm:$0xff]
    %v1535 = vld [vmem:[%s10 + $0x108] sm:$0xff]
    %v1536 = vld [vmem:[%s10 + $0x110] sm:$0xff]
    %v1537 = vld [vmem:[%s10 + $0x118] sm:$0xff]
    %v1538 = vld [vmem:[%s10 + $0x120] sm:$0xff]
    %v1539 = vld [vmem:[%s10 + $0x128] sm:$0xff]
    %v1540 = vld [vmem:[%s10 + $0x130] sm:$0xff]
    %v1541 = vld [vmem:[%s10 + $0x138] sm:$0xff]
    %v1542 = vld [vmem:[%s10 + $0x140] sm:$0xff]
    %v1543 = vld [vmem:[%s10 + $0x148] sm:$0xff]
    %v1544 = vld [vmem:[%s10 + $0x150] sm:$0xff]
    %v1545 = vld [vmem:[%s10 + $0x158] sm:$0xff]
    %v1546 = vld [vmem:[%s10 + $0x160] sm:$0xff]
    %v1547 = vld [vmem:[%s10 + $0x168] sm:$0xff]
    %v1548 = vld [vmem:[%s10 + $0x170] sm:$0xff]
    %v1549 = vld [vmem:[%s10 + $0x178] sm:$0xff]
    %v1550 = vld [vmem:[%s10 + $0x180] sm:$0xff]
    %v1551 = vld [vmem:[%s10 + $0x188] sm:$0xff]
    %v1552 = vld [vmem:[%s10 + $0x190] sm:$0xff]
    %v1553 = vld [vmem:[%s10 + $0x198] sm:$0xff]
    %v1554 = vld [vmem:[%s10 + $0x1a0] sm:$0xff]
    %v1555 = vld [vmem:[%s10 + $0x1a8] sm:$0xff]
    %v1556 = vld [vmem:[%s10 + $0x1b0] sm:$0xff]
    %v1557 = vld [vmem:[%s10 + $0x1b8] sm:$0xff]
    %v1558 = vld [vmem:[%s10 + $0x1c0] sm:$0xff]
    %v1559 = vld [vmem:[%s10 + $0x1c8] sm:$0xff]
    %v1560 = vld [vmem:[%s10 + $0x1d0] sm:$0xff]
    %v1561 = vld [vmem:[%s10 + $0x1d8] sm:$0xff]
    %v1562 = vld [vmem:[%s10 + $0x1e0] sm:$0xff]
    %v1563 = vld [vmem:[%s10 + $0x1e8] sm:$0xff]
    %v1564 = vld [vmem:[%s10 + $0x1f0] sm:$0xff]
    %v1565 = vld [vmem:[%s10 + $0x1f8] sm:$0xff]
    %v1566 = vld [vmem:[%s10 + $0x200] sm:$0xff]
    %v1567 = vld [vmem:[%s10 + $0x208] sm:$0xff]
    %v1568 = vld [vmem:[%s10 + $0x210] sm:$0xff]
    %v1569 = vld [vmem:[%s10 + $0x218] sm:$0xff]
    %v1570 = vld [vmem:[%s10 + $0x220] sm:$0xff]
    %v1571 = vld [vmem:[%s10 + $0x228] sm:$0xff]
    %v1572 = vld [vmem:[%s10 + $0x230] sm:$0xff]
    %v1573 = vld [vmem:[%s10 + $0x238] sm:$0xff]
    %v1574 = vld [vmem:[%s10 + $0x240] sm:$0xff]
    %v1575 = vld [vmem:[%s10 + $0x248] sm:$0xff]
    %v1576 = vld [vmem:[%s10 + $0x250] sm:$0xff]
    %v1577 = vld [vmem:[%s10 + $0x258] sm:$0xff]
    %v1578 = vld [vmem:[%s10 + $0x260] sm:$0xff]
    %v1579 = vld [vmem:[%s10 + $0x268] sm:$0xff]
    %v1580 = vld [vmem:[%s10 + $0x270] sm:$0xff]
    %v1581 = vld [vmem:[%s10 + $0x278] sm:$0xff]
    %v1582 = vld [vmem:[%s10 + $0x280] sm:$0xff]
    %v1583 = vld [vmem:[%s10 + $0x288] sm:$0xff]
    %v1584 = vld [vmem:[%s10 + $0x290] sm:$0xff]
    %v1585 = vld [vmem:[%s10 + $0x298] sm:$0xff]
    %v1586 = vld [vmem:[%s10 + $0x2a0] sm:$0xff]
    %v1587 = vld [vmem:[%s10 + $0x2a8] sm:$0xff]
    %v1588 = vld [vmem:[%s10 + $0x2b0] sm:$0xff]
    %v1589 = vld [vmem:[%s10 + $0x2b8] sm:$0xff]
    %v1590 = vld [vmem:[%s10 + $0x2c0] sm:$0xff]
    %v1591 = vld [vmem:[%s10 + $0x2c8] sm:$0xff]
    %v1592 = vld [vmem:[%s10 + $0x2d0] sm:$0xff]
    %v1593 = vld [vmem:[%s10 + $0x2d8] sm:$0xff]
    %v1594 = vld [vmem:[%s10 + $0x2e0] sm:$0xff]
    %v1595 = vld [vmem:[%s10 + $0x2e8] sm:$0xff]
    %v1596 = vld [vmem:[%s10 + $0x2f0] sm:$0xff]
    %v1597 = vld [vmem:[%s10 + $0x2f8] sm:$0xff]
    %v1598 = vld [vmem:[%s10 + $0x300] sm:$0xff]
    %v1599 = vld [vmem:[%s10 + $0x308] sm:$0xff]
    %v1600 = vld [vmem:[%s10 + $0x310] sm:$0xff]
    %v1601 = vld [vmem:[%s10 + $0x318] sm:$0xff]
    %v1602 = vld [vmem:[%s10 + $0x320] sm:$0xff]
    %v1603 = vld [vmem:[%s10 + $0x328] sm:$0xff]
    %v1604 = vld [vmem:[%s10 + $0x330] sm:$0xff]
    %v1605 = vld [vmem:[%s10 + $0x338] sm:$0xff]
    %v1606 = vld [vmem:[%s10 + $0x340] sm:$0xff]
    %v1607 = vld [vmem:[%s10 + $0x348] sm:$0xff]
    %v1608 = vld [vmem:[%s10 + $0x350] sm:$0xff]
    %v1609 = vld [vmem:[%s10 + $0x358] sm:$0xff]
    %v1610 = vld [vmem:[%s10 + $0x360] sm:$0xff]
    %v1611 = vld [vmem:[%s10 + $0x368] sm:$0xff]
    %v1612 = vld [vmem:[%s10 + $0x370] sm:$0xff]
    %v1613 = vld [vmem:[%s10 + $0x378] sm:$0xff]
    %v1614 = vld [vmem:[%s10 + $0x380] sm:$0xff]
    %v1615 = vld [vmem:[%s10 + $0x388] sm:$0xff]
    %v1616 = vld [vmem:[%s10 + $0x390] sm:$0xff]
    %v1617 = vld [vmem:[%s10 + $0x398] sm:$0xff]
    %v1618 = vld [vmem:[%s10 + $0x3a0] sm:$0xff]
    %v1619 = vld [vmem:[%s10 + $0x3a8] sm:$0xff]
    %v1620 = vld [vmem:[%s10 + $0x3b0] sm:$0xff]
    %v1621 = vld [vmem:[%s10 + $0x3b8] sm:$0xff]
    %v1622 = vld [vmem:[%s10 + $0x3c0] sm:$0xff]
    %v1623 = vld [vmem:[%s10 + $0x3c8] sm:$0xff]
    %v1624 = vld [vmem:[%s10 + $0x3d0] sm:$0xff]
    %v1625 = vld [vmem:[%s10 + $0x3d8] sm:$0xff]
    %v1626 = vld [vmem:[%s10 + $0x3e0] sm:$0xff]
    %v1627 = vld [vmem:[%s10 + $0x3e8] sm:$0xff]
    %v1628 = vld [vmem:[%s10 + $0x3f0] sm:$0xff]
    %v1629 = vld [vmem:[%s10 + $0x3f8] sm:$0xff]
    %v1630 = vld [vmem:[%s9 + $0x1] sm:$0x1]
    %v1631 = vlaneseq
    %v1632 = vshrl.u32 %v1631, 7
    %v1633 = vsub.s32 0, %v1632
    %v1634 = vrot.slane %v1630, %v1633
    %1635 = vmatprep.subr.mxu0 0.0
    %1636 = vmatpush1.msra.mxu0 %v1502
    %1637 = vmatprep.subr.mxu0 0.0
    %1638 = vmatpush1.msra.mxu0 %v1503
    %1639 = vmatprep.subr.mxu0 0.0
    %1640 = vmatpush1.msra.mxu0 %v1504
    %1641 = vmatprep.subr.mxu0 0.0
    %1642 = vmatpush1.msra.mxu0 %v1505
    %1643 = vmatprep.subr.mxu0 0.0
    %1644 = vmatpush1.msra.mxu0 %v1506
    %1645 = vmatprep.subr.mxu0 0.0
    %1646 = vmatpush1.msra.mxu0 %v1507
    %1647 = vmatprep.subr.mxu0 0.0
    %1648 = vmatpush1.msra.mxu0 %v1508
    %1649 = vmatprep.subr.mxu0 0.0
    %1650 = vmatpush1.msra.mxu0 %v1509
    %1651 = vmatprep.subr.mxu0 0.0
    %1652 = vmatpush1.msra.mxu0 %v1510
    %1653 = vmatprep.subr.mxu0 0.0
    %1654 = vmatpush1.msra.mxu0 %v1511
    %1655 = vmatprep.subr.mxu0 0.0
    %1656 = vmatpush1.msra.mxu0 %v1512
    %1657 = vmatprep.subr.mxu0 0.0
    %1658 = vmatpush1.msra.mxu0 %v1513
    %1659 = vmatprep.subr.mxu0 0.0
    %1660 = vmatpush1.msra.mxu0 %v1514
    %1661 = vmatprep.subr.mxu0 0.0
    %1662 = vmatpush1.msra.mxu0 %v1515
    %1663 = vmatprep.subr.mxu0 0.0
    %1664 = vmatpush1.msra.mxu0 %v1516
    %1665 = vmatprep.subr.mxu0 0.0
    %1666 = vmatpush1.msra.mxu0 %v1517
    %1667 = vmatprep.subr.mxu0 0.0
    %1668 = vmatpush1.msra.mxu0 %v1518
    %1669 = vmatprep.subr.mxu0 0.0
    %1670 = vmatpush1.msra.mxu0 %v1519
    %1671 = vmatprep.subr.mxu0 0.0
    %1672 = vmatpush1.msra.mxu0 %v1520
    %1673 = vmatprep.subr.mxu0 0.0
    %1674 = vmatpush1.msra.mxu0 %v1521
    %1675 = vmatprep.subr.mxu0 0.0
    %1676 = vmatpush1.msra.mxu0 %v1522
    %1677 = vmatprep.subr.mxu0 0.0
    %1678 = vmatpush1.msra.mxu0 %v1523
    %1679 = vmatprep.subr.mxu0 0.0
    %1680 = vmatpush1.msra.mxu0 %v1524
    %1681 = vmatprep.subr.mxu0 0.0
    %1682 = vmatpush1.msra.mxu0 %v1525
    %1683 = vmatprep.subr.mxu0 0.0
    %1684 = vmatpush1.msra.mxu0 %v1526
    %1685 = vmatprep.subr.mxu0 0.0
    %1686 = vmatpush1.msra.mxu0 %v1527
    %1687 = vmatprep.subr.mxu0 0.0
    %1688 = vmatpush1.msra.mxu0 %v1528
    %1689 = vmatprep.subr.mxu0 0.0
    %1690 = vmatpush1.msra.mxu0 %v1529
    %1691 = vmatprep.subr.mxu0 0.0
    %1692 = vmatpush1.msra.mxu0 %v1530
    %1693 = vmatprep.subr.mxu0 0.0
    %1694 = vmatpush1.msra.mxu0 %v1531
    %1695 = vmatprep.subr.mxu0 0.0
    %1696 = vmatpush1.msra.mxu0 %v1532
    %1697 = vmatprep.subr.mxu0 0.0
    %1698 = vmatpush1.msra.mxu0 %v1533
    %1699 = vmatprep.mubr.f32.mxu0 %v1495
    %1700 = vmatmul.mubr.f32.gmra.mrb[0].mxu0 %v1494
    %v1701 = vpop.f32.mrb[0].mxu0
    %v1702 = vadd.f32 %v1634, %v1701
    %v1703 = vpop.f32.mrb[0].mxu0
    %1704 = vdwg.mxu0
    %1705 = vmatprep.subr.mxu0 0.0
    %1706 = vmatpush1.msra.mxu0 %v1534
    %1707 = vmatprep.subr.mxu0 0.0
    %1708 = vmatpush1.msra.mxu0 %v1535
    %1709 = vmatprep.subr.mxu0 0.0
    %1710 = vmatpush1.msra.mxu0 %v1536
    %1711 = vmatprep.subr.mxu0 0.0
    %1712 = vmatpush1.msra.mxu0 %v1537
    %1713 = vmatprep.subr.mxu0 0.0
    %1714 = vmatpush1.msra.mxu0 %v1538
    %1715 = vmatprep.subr.mxu0 0.0
    %1716 = vmatpush1.msra.mxu0 %v1539
    %1717 = vmatprep.subr.mxu0 0.0
    %1718 = vmatpush1.msra.mxu0 %v1540
    %1719 = vmatprep.subr.mxu0 0.0
    %1720 = vmatpush1.msra.mxu0 %v1541
    %1721 = vmatprep.subr.mxu0 0.0
    %1722 = vmatpush1.msra.mxu0 %v1542
    %1723 = vmatprep.subr.mxu0 0.0
    %1724 = vmatpush1.msra.mxu0 %v1543
    %1725 = vmatprep.subr.mxu0 0.0
    %1726 = vmatpush1.msra.mxu0 %v1544
    %1727 = vmatprep.subr.mxu0 0.0
    %1728 = vmatpush1.msra.mxu0 %v1545
    %1729 = vmatprep.subr.mxu0 0.0
    %1730 = vmatpush1.msra.mxu0 %v1546
    %1731 = vmatprep.subr.mxu0 0.0
    %1732 = vmatpush1.msra.mxu0 %v1547
    %1733 = vmatprep.subr.mxu0 0.0
    %1734 = vmatpush1.msra.mxu0 %v1548
    %1735 = vmatprep.subr.mxu0 0.0
    %1736 = vmatpush1.msra.mxu0 %v1549
    %1737 = vmatprep.subr.mxu0 0.0
    %1738 = vmatpush1.msra.mxu0 %v1550
    %1739 = vmatprep.subr.mxu0 0.0
    %1740 = vmatpush1.msra.mxu0 %v1551
    %1741 = vmatprep.subr.mxu0 0.0
    %1742 = vmatpush1.msra.mxu0 %v1552
    %1743 = vmatprep.subr.mxu0 0.0
    %1744 = vmatpush1.msra.mxu0 %v1553
    %1745 = vmatprep.subr.mxu0 0.0
    %1746 = vmatpush1.msra.mxu0 %v1554
    %1747 = vmatprep.subr.mxu0 0.0
    %1748 = vmatpush1.msra.mxu0 %v1555
    %1749 = vmatprep.subr.mxu0 0.0
    %1750 = vmatpush1.msra.mxu0 %v1556
    %1751 = vmatprep.subr.mxu0 0.0
    %1752 = vmatpush1.msra.mxu0 %v1557
    %1753 = vmatprep.subr.mxu0 0.0
    %1754 = vmatpush1.msra.mxu0 %v1558
    %1755 = vmatprep.subr.mxu0 0.0
    %1756 = vmatpush1.msra.mxu0 %v1559
    %1757 = vmatprep.subr.mxu0 0.0
    %1758 = vmatpush1.msra.mxu0 %v1560
    %1759 = vmatprep.subr.mxu0 0.0
    %1760 = vmatpush1.msra.mxu0 %v1561
    %1761 = vmatprep.subr.mxu0 0.0
    %1762 = vmatpush1.msra.mxu0 %v1562
    %1763 = vmatprep.subr.mxu0 0.0
    %1764 = vmatpush1.msra.mxu0 %v1563
    %1765 = vmatprep.subr.mxu0 0.0
    %1766 = vmatpush1.msra.mxu0 %v1564
    %1767 = vmatprep.subr.mxu0 0.0
    %1768 = vmatpush1.msra.mxu0 %v1565
    %1769 = vmatprep.mubr.f32.mxu0 %v1497
    %1770 = vmatmul.mubr.f32.gmra.mrb[0].mxu0 %v1496
    %v1771 = vpop.f32.mrb[0].mxu0
    %v1772 = vadd.f32 %v1702, %v1771
    %v1773 = vpop.f32.mrb[0].mxu0
    %1774 = vdwg.mxu0
    %1775 = vmatprep.subr.mxu0 0.0
    %1776 = vmatpush1.msra.mxu0 %v1566
    %1777 = vmatprep.subr.mxu0 0.0
    %1778 = vmatpush1.msra.mxu0 %v1567
    %1779 = vmatprep.subr.mxu0 0.0
    %1780 = vmatpush1.msra.mxu0 %v1568
    %1781 = vmatprep.subr.mxu0 0.0
    %1782 = vmatpush1.msra.mxu0 %v1569
    %1783 = vmatprep.subr.mxu0 0.0
    %1784 = vmatpush1.msra.mxu0 %v1570
    %1785 = vmatprep.subr.mxu0 0.0
    %1786 = vmatpush1.msra.mxu0 %v1571
    %1787 = vmatprep.subr.mxu0 0.0
    %1788 = vmatpush1.msra.mxu0 %v1572
    %1789 = vmatprep.subr.mxu0 0.0
    %1790 = vmatpush1.msra.mxu0 %v1573
    %1791 = vmatprep.subr.mxu0 0.0
    %1792 = vmatpush1.msra.mxu0 %v1574
    %1793 = vmatprep.subr.mxu0 0.0
    %1794 = vmatpush1.msra.mxu0 %v1575
    %1795 = vmatprep.subr.mxu0 0.0
    %1796 = vmatpush1.msra.mxu0 %v1576
    %1797 = vmatprep.subr.mxu0 0.0
    %1798 = vmatpush1.msra.mxu0 %v1577
    %1799 = vmatprep.subr.mxu0 0.0
    %1800 = vmatpush1.msra.mxu0 %v1578
    %1801 = vmatprep.subr.mxu0 0.0
    %1802 = vmatpush1.msra.mxu0 %v1579
    %1803 = vmatprep.subr.mxu0 0.0
    %1804 = vmatpush1.msra.mxu0 %v1580
    %1805 = vmatprep.subr.mxu0 0.0
    %1806 = vmatpush1.msra.mxu0 %v1581
    %1807 = vmatprep.subr.mxu0 0.0
    %1808 = vmatpush1.msra.mxu0 %v1582
    %1809 = vmatprep.subr.mxu0 0.0
    %1810 = vmatpush1.msra.mxu0 %v1583
    %1811 = vmatprep.subr.mxu0 0.0
    %1812 = vmatpush1.msra.mxu0 %v1584
    %1813 = vmatprep.subr.mxu0 0.0
    %1814 = vmatpush1.msra.mxu0 %v1585
    %1815 = vmatprep.subr.mxu0 0.0
    %1816 = vmatpush1.msra.mxu0 %v1586
    %1817 = vmatprep.subr.mxu0 0.0
    %1818 = vmatpush1.msra.mxu0 %v1587
    %1819 = vmatprep.subr.mxu0 0.0
    %1820 = vmatpush1.msra.mxu0 %v1588
    %1821 = vmatprep.subr.mxu0 0.0
    %1822 = vmatpush1.msra.mxu0 %v1589
    %1823 = vmatprep.subr.mxu0 0.0
    %1824 = vmatpush1.msra.mxu0 %v1590
    %1825 = vmatprep.subr.mxu0 0.0
    %1826 = vmatpush1.msra.mxu0 %v1591
    %1827 = vmatprep.subr.mxu0 0.0
    %1828 = vmatpush1.msra.mxu0 %v1592
    %1829 = vmatprep.subr.mxu0 0.0
    %1830 = vmatpush1.msra.mxu0 %v1593
    %1831 = vmatprep.subr.mxu0 0.0
    %1832 = vmatpush1.msra.mxu0 %v1594
    %1833 = vmatprep.subr.mxu0 0.0
    %1834 = vmatpush1.msra.mxu0 %v1595
    %1835 = vmatprep.subr.mxu0 0.0
    %1836 = vmatpush1.msra.mxu0 %v1596
    %1837 = vmatprep.subr.mxu0 0.0
    %1838 = vmatpush1.msra.mxu0 %v1597
    %1839 = vmatprep.mubr.f32.mxu0 %v1499
    %1840 = vmatmul.mubr.f32.gmra.mrb[0].mxu0 %v1498
    %v1841 = vpop.f32.mrb[0].mxu0
    %v1842 = vadd.f32 %v1772, %v1841
    %v1843 = vpop.f32.mrb[0].mxu0
    %1844 = vdwg.mxu0
    %1845 = vmatprep.subr.mxu0 0.0
    %1846 = vmatpush1.msra.mxu0 %v1598
    %1847 = vmatprep.subr.mxu0 0.0
    %1848 = vmatpush1.msra.mxu0 %v1599
    %1849 = vmatprep.subr.mxu0 0.0
    %1850 = vmatpush1.msra.mxu0 %v1600
    %1851 = vmatprep.subr.mxu0 0.0
    %1852 = vmatpush1.msra.mxu0 %v1601
    %1853 = vmatprep.subr.mxu0 0.0
    %1854 = vmatpush1.msra.mxu0 %v1602
    %1855 = vmatprep.subr.mxu0 0.0
    %1856 = vmatpush1.msra.mxu0 %v1603
    %1857 = vmatprep.subr.mxu0 0.0
    %1858 = vmatpush1.msra.mxu0 %v1604
    %1859 = vmatprep.subr.mxu0 0.0
    %1860 = vmatpush1.msra.mxu0 %v1605
    %1861 = vmatprep.subr.mxu0 0.0
    %1862 = vmatpush1.msra.mxu0 %v1606
    %1863 = vmatprep.subr.mxu0 0.0
    %1864 = vmatpush1.msra.mxu0 %v1607
    %1865 = vmatprep.subr.mxu0 0.0
    %1866 = vmatpush1.msra.mxu0 %v1608
    %1867 = vmatprep.subr.mxu0 0.0
    %1868 = vmatpush1.msra.mxu0 %v1609
    %1869 = vmatprep.subr.mxu0 0.0
    %1870 = vmatpush1.msra.mxu0 %v1610
    %1871 = vmatprep.subr.mxu0 0.0
    %1872 = vmatpush1.msra.mxu0 %v1611
    %1873 = vmatprep.subr.mxu0 0.0
    %1874 = vmatpush1.msra.mxu0 %v1612
    %1875 = vmatprep.subr.mxu0 0.0
    %1876 = vmatpush1.msra.mxu0 %v1613
    %1877 = vmatprep.subr.mxu0 0.0
    %1878 = vmatpush1.msra.mxu0 %v1614
    %1879 = vmatprep.subr.mxu0 0.0
    %1880 = vmatpush1.msra.mxu0 %v1615
    %1881 = vmatprep.subr.mxu0 0.0
    %1882 = vmatpush1.msra.mxu0 %v1616
    %1883 = vmatprep.subr.mxu0 0.0
    %1884 = vmatpush1.msra.mxu0 %v1617
    %1885 = vmatprep.subr.mxu0 0.0
    %1886 = vmatpush1.msra.mxu0 %v1618
    %1887 = vmatprep.subr.mxu0 0.0
    %1888 = vmatpush1.msra.mxu0 %v1619
    %1889 = vmatprep.subr.mxu0 0.0
    %1890 = vmatpush1.msra.mxu0 %v1620
    %1891 = vmatprep.subr.mxu0 0.0
    %1892 = vmatpush1.msra.mxu0 %v1621
    %1893 = vmatprep.subr.mxu0 0.0
    %1894 = vmatpush1.msra.mxu0 %v1622
    %1895 = vmatprep.subr.mxu0 0.0
    %1896 = vmatpush1.msra.mxu0 %v1623
    %1897 = vmatprep.subr.mxu0 0.0
    %1898 = vmatpush1.msra.mxu0 %v1624
    %1899 = vmatprep.subr.mxu0 0.0
    %1900 = vmatpush1.msra.mxu0 %v1625
    %1901 = vmatprep.subr.mxu0 0.0
    %1902 = vmatpush1.msra.mxu0 %v1626
    %1903 = vmatprep.subr.mxu0 0.0
    %1904 = vmatpush1.msra.mxu0 %v1627
    %1905 = vmatprep.subr.mxu0 0.0
    %1906 = vmatpush1.msra.mxu0 %v1628
    %1907 = vmatprep.subr.mxu0 0.0
    %1908 = vmatpush1.msra.mxu0 %v1629
    %1909 = vmatprep.mubr.f32.mxu0 %v1501
    %1910 = vmatmul.mubr.f32.gmra.mrb[0].mxu0 %v1500
    %v1911 = vpop.f32.mrb[0].mxu0
    %v1912 = vadd.f32 %v1842, %v1911
    %v1913 = vpop.f32.mrb[0].mxu0
    %1914 = vdwg.mxu0
    %vm1915 = vcmask 64512
    %1916 = vst.msk [vmem:[#allocation2] sm:$0xff] %vm1915, %v1912
    // Predicated region
    $region46: #{tpu_custom_call.1} parent=1 // pred_check
      _
    $region47: #{tpu_custom_call.1} parent=1 // pred_check_branch
      %1918 = sbr.rel (0) target = $region49
    $region48: #{tpu_custom_call.1} parent=1 // pred_region
      %s1920 = ssub.s32 128, 128
      %1921 = vsyncadd [#allocation3], %s1920
      %s1923 = sshll.u32 [#allocation2], 4
      %s1924 = int_to_ptr.vmem [resolvable:$true] %s1923
      %1926 = dma.vmem_to_hbm [thread:$0]  %s1924, 128, %s11, [#allocation3]
    $region49: #{tpu_custom_call.1} parent=1 // pred_fallthru
      _
    // Predicated region
    $region50: #{tpu_custom_call.1} parent=1 // pred_check
      _
    $region51: #{tpu_custom_call.1} parent=1 // pred_check_branch
      %1928 = sbr.rel (0) target = $region53
    $region52: #{tpu_custom_call.1} parent=1 // pred_region
      %1929 = dma.done [#allocation3], 128
    $region53: #{tpu_custom_call.1} parent=1 // pred_fallthru
      _
    %1930 = vsyncpa [#allocation3], 1

</llo_original>
